<compile_context>
chip_gen: v7x
topology: tpu7x:2x2x1
jax: 0.10.0
libtpu: 0.0.40
codegen_flags: <defaults>
</compile_context>

<pallas_src>
import functools
import math

import jax
import jax.numpy as jnp
from jax import lax
from jax.experimental import pallas as pl
from jax.experimental.pallas import tpu as pltpu

NEG_INF = -1e30  # large finite negative; safe in f32 softmax bookkeeping


def _cparams(dim_sem, vmem_limit_bytes=None):
    return pltpu.CompilerParams(dimension_semantics=dim_sem,
                                vmem_limit_bytes=vmem_limit_bytes)


# --------------------------------------------------------------------------- #
# 1) Fused qkv projection: (B, T, D) -> q, k, v each (B, H, T, d) head-major.
# --------------------------------------------------------------------------- #
def _qkv_kernel(x_ref, w_ref, b_ref, q_ref, k_ref, v_ref, y_sc, *,
                n_head, head_dim):
    # x_ref: (Tr, D)  w_ref: (D, 3D)  b_ref: (1, 3D)
    # q/k/v_ref: (H, Tr, d)           y_sc: (Tr, 3D) VMEM scratch
    d_model = n_head * head_dim
    acc = jnp.dot(x_ref[...], w_ref[...], preferred_element_type=jnp.float32)
    y_sc[...] = (acc + b_ref[...].astype(jnp.float32)).astype(y_sc.dtype)
    # Head-major relayout on the VMEM load/store slots (static lane slices):
    # replaces the 3x reshape/transpose HBM passes the wrapper used to do.
    for h in range(n_head):
        c = h * head_dim
        q_ref[h] = y_sc[:, c:c + head_dim]
        k_ref[h] = y_sc[:, d_model + c:d_model + c + head_dim]
        v_ref[h] = y_sc[:, 2 * d_model + c:2 * d_model + c + head_dim]


def _qkv_projection(x, w, b, *, n_head, block_rows, vmem_limit_bytes=None):
    B, T, D = x.shape
    head_dim = D // n_head
    tr = min(block_rows, T)
    assert T % tr == 0
    head_major = jax.ShapeDtypeStruct((B, n_head, T, head_dim), x.dtype)
    out_spec = pl.BlockSpec((None, n_head, tr, head_dim),
                            lambda bi, ti: (bi, 0, ti, 0))
    return pl.pallas_call(
        functools.partial(_qkv_kernel, n_head=n_head, head_dim=head_dim),
        out_shape=(head_major, head_major, head_major),
        grid_spec=pltpu.PrefetchScalarGridSpec(
            num_scalar_prefetch=0,
            grid=(B, T // tr),
            in_specs=[
                pl.BlockSpec((None, tr, D), lambda bi, ti: (bi, ti, 0)),  # x rows
                # Fully resident weight / bias: fetched once for the whole call.
                # TODO(synk): for D >= 2048 (or f32 weights on v5e/v7x VMEM
                # budgets) fall back to a column-tiled grid with the column
                # axis OUTERMOST, or pass bf16 weights + vmem_limit_bytes.
                pl.BlockSpec((D, 3 * D), lambda bi, ti: (0, 0)),
                pl.BlockSpec((1, 3 * D), lambda bi, ti: (0, 0)),
            ],
            out_specs=(out_spec, out_spec, out_spec),
            scratch_shapes=[pltpu.VMEM((tr, 3 * D), x.dtype)],
        ),
        compiler_params=_cparams(("parallel", "parallel"), vmem_limit_bytes),
    )(x, w, b)


# --------------------------------------------------------------------------- #
# 2) Flash attention over the flattened lower-triangular tile grid.
# --------------------------------------------------------------------------- #
def _flash_kernel(qi_ref, kj_ref, q_ref, k_ref, v_ref, o_ref,
                  qs_sc, m_sc, l_sc, acc_sc, *, scale, transposed):
    s_idx = pl.program_id(2)
    qi = qi_ref[s_idx]
    kj = kj_ref[s_idx]

    @pl.when(kj == 0)
    def _init():
        qs_sc[...] = (q_ref[...] * scale).astype(qs_sc.dtype)  # hoisted q rescale
        m_sc[...] = jnp.full_like(m_sc, NEG_INF)
        l_sc[...] = jnp.zeros_like(l_sc)
        acc_sc[...] = jnp.zeros_like(acc_sc)

    def _process(apply_mask):
        q = qs_sc[...]
        k = k_ref[...]
        v = v_ref[...]
        if transposed:
            # s[r, c] = k[r] . q[c] -> (Tkv, Tq); stats lane-dense (1, Tq).
            s = lax.dot_general(k, q, (((1,), (1,)), ((), ())),
                                preferred_element_type=jnp.float32)
            kv_ax = 0
        else:
            s = lax.dot_general(q, k, (((1,), (1,)), ((), ())),
                                preferred_element_type=jnp.float32)   # (Tq, Tkv)
            kv_ax = 1
        if apply_mask:
            # Only the diagonal tile needs the causal mask (Tq == Tkv, kj == qi).
            kv_pos = lax.broadcasted_iota(jnp.int32, s.shape, kv_ax)
            q_pos = lax.broadcasted_iota(jnp.int32, s.shape, 1 - kv_ax)
            s = jnp.where(kv_pos <= q_pos, s, NEG_INF)

        m_prev = m_sc[...]
        m_new = jnp.maximum(m_prev, jnp.max(s, axis=kv_ax, keepdims=True))
        alpha = jnp.exp(m_prev - m_new)
        # TODO(synk): on v6e/v7x, exp over bf16 (cast s - m_new to bf16) ~2x the
        # EUP rate; kept f32 here for v5e compatibility and demo numerics.
        p = jnp.exp(s - m_new)
        l_sc[...] = alpha * l_sc[...] + jnp.sum(p, axis=kv_ax, keepdims=True)
        if transposed:
            pv = lax.dot_general(v, p.astype(v.dtype), (((0,), (0,)), ((), ())),
                                 preferred_element_type=jnp.float32)  # (d, Tq)
        else:
            pv = jnp.dot(p.astype(v.dtype), v,
                         preferred_element_type=jnp.float32)          # (Tq, d)
        acc_sc[...] = alpha * acc_sc[...] + pv
        m_sc[...] = m_new

    @pl.when(kj < qi)      # fully-visible tile: no mask work at all
    def _():
        _process(apply_mask=False)

    @pl.when(kj == qi)     # diagonal tile: mask, then finalize this q tile
    def _():
        _process(apply_mask=True)
        # Approx reciprocal (~1e-3 rel err) is fine for the forward pass; use
        # approx=False if this is reused for training / logit-sensitive decode.
        inv_l = pl.reciprocal(l_sc[...], approx=True)
        o = acc_sc[...] * inv_l
        if transposed:
            o = jnp.transpose(o)       # one (d,Tq)->(Tq,d) XLU transpose per q tile
        o_ref[...] = o.astype(o_ref.dtype)


def _flash_attention(q, k, v, *, block_q, block_kv, scale):
    B, H, T, dh = q.shape
    tq = min(block_q, T)
    tkv = min(block_kv, T)
    assert tq == tkv and T % tq == 0, "flash tiling assumes Tq == Tkv dividing T"
    nq = T // tq

    # Flatten the lower-triangular (q-tile, kv-tile) pairs into one grid axis:
    # fully-masked tiles are never visited (was ~50% of kv steps at long T).
    qi_list, kj_list = [], []
    for i in range(nq):
        for j in range(i + 1):
            qi_list.append(i)
            kj_list.append(j)
    n_steps = len(qi_list)
    qi_of = jnp.asarray(qi_list, dtype=jnp.int32)
    kj_of = jnp.asarray(kj_list, dtype=jnp.int32)

    # Transposed PV accumulation fills the MXU N dim with Tq instead of the head
    # dim; use it for MXU-sized tiles, keep the plain orientation for tiny tiles.
    transposed = (tq % 128 == 0) and (dh % 8 == 0)
    stat_shape = (1, tq) if transposed else (tq, 1)
    acc_shape = (dh, tq) if transposed else (tq, dh)

    q_map = lambda bi, hi, si, qi_r, kj_r: (bi, hi, qi_r[si], 0)
    kv_map = lambda bi, hi, si, qi_r, kj_r: (bi, hi, kj_r[si], 0)

    return pl.pallas_call(
        functools.partial(_flash_kernel, scale=scale, transposed=transposed),
        out_shape=jax.ShapeDtypeStruct((B, H, T, dh), q.dtype),
        grid_spec=pltpu.PrefetchScalarGridSpec(
            num_scalar_prefetch=2,
            grid=(B, H, n_steps),
            in_specs=[
                pl.BlockSpec((None, None, tq, dh), q_map),
                # TODO(synk): on v5e (lower HBM BW) add pipeline_mode=pl.Buffered(3)
                # to k/v if profiling shows exposed per-step DMA.
                pl.BlockSpec((None, None, tkv, dh), kv_map),
                pl.BlockSpec((None, None, tkv, dh), kv_map),
            ],
            out_specs=pl.BlockSpec((None, None, tq, dh), q_map),
            scratch_shapes=[
                pltpu.VMEM((tq, dh), q.dtype),        # q * scale (per q tile)
                pltpu.VMEM(stat_shape, jnp.float32),  # running max m
                pltpu.VMEM(stat_shape, jnp.float32),  # running denom l
                pltpu.VMEM(acc_shape, jnp.float32),   # output accumulator
            ],
        ),
        compiler_params=_cparams(("parallel", "parallel", "arbitrary")),
    )(qi_of, kj_of, q, k, v)


# --------------------------------------------------------------------------- #
# 3) Output projection: (B, H, T, d) -> (B, T, D), heads regathered in-kernel.
# --------------------------------------------------------------------------- #
def _proj_kernel(att_ref, w_ref, b_ref, o_ref, x2_sc, *, n_head, head_dim):
    # att_ref: (H, Tr, d)  w_ref: (D, D)  b_ref: (1, D)  o_ref: (Tr, D)
    for h in range(n_head):
        c = h * head_dim
        x2_sc[:, c:c + head_dim] = att_ref[h]      # lane-contiguous regather
    acc = jnp.dot(x2_sc[...], w_ref[...], preferred_element_type=jnp.float32)
    o_ref[...] = (acc + b_ref[...].astype(jnp.float32)).astype(o_ref.dtype)


def _out_projection(att, w, b, *, block_rows, vmem_limit_bytes=None):
    B, H, T, head_dim = att.shape
    D = H * head_dim
    N = w.shape[1]
    tr = min(block_rows, T)
    assert T % tr == 0
    return pl.pallas_call(
        functools.partial(_proj_kernel, n_head=H, head_dim=head_dim),
        out_shape=jax.ShapeDtypeStruct((B, T, N), att.dtype),
        grid_spec=pltpu.PrefetchScalarGridSpec(
            num_scalar_prefetch=0,
            grid=(B, T // tr),
            in_specs=[
                pl.BlockSpec((None, H, tr, head_dim), lambda bi, ti: (bi, 0, ti, 0)),
                pl.BlockSpec((D, N), lambda bi, ti: (0, 0)),   # resident weight
                pl.BlockSpec((1, N), lambda bi, ti: (0, 0)),   # resident bias
            ],
            out_specs=pl.BlockSpec((None, tr, N), lambda bi, ti: (bi, ti, 0)),
            scratch_shapes=[pltpu.VMEM((tr, D), att.dtype)],
        ),
        compiler_params=_cparams(("parallel", "parallel"), vmem_limit_bytes),
    )(att, w, b)


# --------------------------------------------------------------------------- #
# Full forward
# --------------------------------------------------------------------------- #
@functools.partial(jax.jit, static_argnames=("n_head", "block_q", "block_kv",
                                             "block_rows", "vmem_limit_bytes"))
def self_attention(x, wqkv, bqkv, wproj, bproj, *, n_head,
                   block_q=256, block_kv=256, block_rows=256,
                   vmem_limit_bytes=None):
    # block_q/block_kv worth sweeping up to 512 on v6e/v7x (per-step overhead
    # amortization); 256 is a safe default across v5e/v6e/v7x.
    B, T, D = x.shape
    assert D % n_head == 0
    dh = D // n_head
    scale = 1.0 / math.sqrt(dh)

    q, k, v = _qkv_projection(x, wqkv, bqkv, n_head=n_head,
                              block_rows=block_rows,
                              vmem_limit_bytes=vmem_limit_bytes)      # 3x (B,H,T,d)
    out = _flash_attention(q, k, v, block_q=block_q, block_kv=block_kv,
                           scale=scale)                               # (B,H,T,d)
    return _out_projection(out, wproj, bproj, block_rows=block_rows,
                           vmem_limit_bytes=vmem_limit_bytes)         # (B,T,D)


# --------------------------------------------------------------------------- #
# Pure-JAX reference mirroring the PyTorch forward.
# --------------------------------------------------------------------------- #
def reference_self_attention(x, wqkv, bqkv, wproj, bproj, *, n_head):
    B, T, D = x.shape
    d = D // n_head
    qkv = x @ wqkv + bqkv[0]
    q, k, v = jnp.split(qkv, 3, axis=-1)
    q = q.reshape(B, T, n_head, d).transpose(0, 2, 1, 3)
    k = k.reshape(B, T, n_head, d).transpose(0, 2, 1, 3)
    v = v.reshape(B, T, n_head, d).transpose(0, 2, 1, 3)
    att = (q @ jnp.swapaxes(k, -1, -2)) * (1.0 / math.sqrt(d))
    mask = jnp.tril(jnp.ones((T, T), dtype=bool))[None, None]
    att = jnp.where(mask, att, -jnp.inf)
    att = jax.nn.softmax(att, axis=-1)
    out = (att @ v).transpose(0, 2, 1, 3).reshape(B, T, D)
    return out @ wproj + bproj[0]


if __name__ == "__main__":
    # Small GPTConfig-like setup: n_embd=32, n_head=4, T=8 (<= block_size).
    B, T, D, H = 2, 8, 32, 4

    key = jax.random.PRNGKey(0)
    kx, kw1, kb1, kw2, kb2 = jax.random.split(key, 5)

    x = jax.random.normal(kx, (B, T, D), dtype=jnp.float32)

    # nn.Linear weights are (out, in); we store them transposed as (in, out).
    s1 = 1.0 / math.sqrt(D)
    wqkv = jax.random.uniform(kw1, (D, 3 * D), jnp.float32, -s1, s1)
    bqkv = jax.random.uniform(kb1, (1, 3 * D), jnp.float32, -s1, s1)
    wproj = jax.random.uniform(kw2, (D, D), jnp.float32, -s1, s1)
    bproj = jax.random.uniform(kb2, (1, D), jnp.float32, -s1, s1)

    y = self_attention(x, wqkv, bqkv, wproj, bproj, n_head=H)
    y = jax.block_until_ready(y)

    y_ref = reference_self_attention(x, wqkv, bqkv, wproj, bproj, n_head=H)
    # Tolerance slightly loosened vs exact f32 because the finalize uses the
    # EUP approximate reciprocal for the softmax denominator.
    assert jnp.allclose(y, y_ref, atol=2e-3, rtol=2e-3), "mismatch vs reference"

    print("KERNEL_OK")
</pallas_src>

<mosaic_0001>
module attributes {stable_mosaic.version = 11 : i64} {
  func.func @_qkv_kernel(%arg0: i32, %arg1: i32, %arg2: memref<1x8x32xf32, #tpu.memory_space<vmem>>, %arg3: memref<32x96xf32, #tpu.memory_space<vmem>>, %arg4: memref<1x96xf32, #tpu.memory_space<vmem>>, %arg5: memref<1x4x8x8xf32, #tpu.memory_space<vmem>>, %arg6: memref<1x4x8x8xf32, #tpu.memory_space<vmem>>, %arg7: memref<1x4x8x8xf32, #tpu.memory_space<vmem>>, %arg8: memref<8x96xf32, #tpu.memory_space<vmem>>) attributes {dimension_semantics = [#tpu.dimension_semantics<parallel>, #tpu.dimension_semantics<parallel>], iteration_bounds = array<i64: 2, 1>, scalar_prefetch = 0 : i64, scratch_operands = 1 : i64, tpu.core_type = #tpu.core_type<tc>, window_params = [{transform_indices = @transform_0, window_bounds = array<i64: 1, 8, 32>}, {pipeline_mode = #tpu.pipeline_mode<synchronous>, transform_indices = @transform_1, window_bounds = array<i64: 32, 96>}, {pipeline_mode = #tpu.pipeline_mode<synchronous>, transform_indices = @transform_2, window_bounds = array<i64: 1, 96>}, {transform_indices = @transform_3, window_bounds = array<i64: 1, 4, 8, 8>}, {transform_indices = @transform_4, window_bounds = array<i64: 1, 4, 8, 8>}, {transform_indices = @transform_5, window_bounds = array<i64: 1, 4, 8, 8>}]} {
    %c0 = arith.constant 0 : index
    %c0_0 = arith.constant 0 : index
    %c0_1 = arith.constant 0 : index
    %0 = vector.load %arg2[%c0, %c0_0, %c0_1] : memref<1x8x32xf32, #tpu.memory_space<vmem>>, vector<1x8x32xf32>
    %1 = vector.shape_cast %0 : vector<1x8x32xf32> to vector<8x32xf32>
    %c0_2 = arith.constant 0 : index
    %c0_3 = arith.constant 0 : index
    %2 = vector.load %arg3[%c0_2, %c0_3] : memref<32x96xf32, #tpu.memory_space<vmem>>, vector<32x96xf32>
    %cst = arith.constant dense<0.000000e+00> : vector<8x96xf32>
    %3 = tpu.matmul %1, %2, %cst {dimension_numbers = #tpu.dot_dimension_numbers<[1], [0], [0], [1], [0, 0, 1, 1], [], []>} : vector<8x32xf32>, vector<32x96xf32>, vector<8x96xf32> -> vector<8x96xf32>
    %c0_4 = arith.constant 0 : index
    %c0_5 = arith.constant 0 : index
    %4 = vector.load %arg4[%c0_4, %c0_5] : memref<1x96xf32, #tpu.memory_space<vmem>>, vector<1x96xf32>
    %5 = vector.broadcast %4 : vector<1x96xf32> to vector<8x96xf32>
    %6 = arith.addf %3, %5 : vector<8x96xf32>
    %c0_6 = arith.constant 0 : index
    %c0_7 = arith.constant 0 : index
    %7 = vector.load %arg8[%c0_6, %c0_7] : memref<8x96xf32, #tpu.memory_space<vmem>>, vector<8x96xf32>
    tpu.vector_store %arg8[%c0_6, %c0_7], %6 {strides = array<i32>} : memref<8x96xf32, #tpu.memory_space<vmem>>, vector<8x96xf32>,
    %c0_8 = arith.constant 0 : index
    %c0_9 = arith.constant 0 : index
    %8 = vector.load %arg8[%c0_8, %c0_9] : memref<8x96xf32, #tpu.memory_space<vmem>>, vector<8x8xf32>
    %c0_10 = arith.constant 0 : index
    %c0_11 = arith.constant 0 : index
    %c0_12 = arith.constant 0 : index
    %c0_13 = arith.constant 0 : index
    %9 = vector.load %arg5[%c0_10, %c0_11, %c0_12, %c0_13] : memref<1x4x8x8xf32, #tpu.memory_space<vmem>>, vector<1x1x8x8xf32>
    %10 = vector.shape_cast %9 : vector<1x1x8x8xf32> to vector<8x8xf32>
    %11 = vector.shape_cast %8 : vector<8x8xf32> to vector<1x1x8x8xf32>
    tpu.vector_store %arg5[%c0_10, %c0_11, %c0_12, %c0_13], %11 {strides = array<i32>} : memref<1x4x8x8xf32, #tpu.memory_space<vmem>>, vector<1x1x8x8xf32>,
    %c0_14 = arith.constant 0 : index
    %c32 = arith.constant 32 : index
    %12 = vector.load %arg8[%c0_14, %c32] : memref<8x96xf32, #tpu.memory_space<vmem>>, vector<8x8xf32>
    %c0_15 = arith.constant 0 : index
    %c0_16 = arith.constant 0 : index
    %c0_17 = arith.constant 0 : index
    %c0_18 = arith.constant 0 : index
    %13 = vector.load %arg6[%c0_15, %c0_16, %c0_17, %c0_18] : memref<1x4x8x8xf32, #tpu.memory_space<vmem>>, vector<1x1x8x8xf32>
    %14 = vector.shape_cast %13 : vector<1x1x8x8xf32> to vector<8x8xf32>
    %15 = vector.shape_cast %12 : vector<8x8xf32> to vector<1x1x8x8xf32>
    tpu.vector_store %arg6[%c0_15, %c0_16, %c0_17, %c0_18], %15 {strides = array<i32>} : memref<1x4x8x8xf32, #tpu.memory_space<vmem>>, vector<1x1x8x8xf32>,
    %c0_19 = arith.constant 0 : index
    %c64 = arith.constant 64 : index
    %16 = vector.load %arg8[%c0_19, %c64] : memref<8x96xf32, #tpu.memory_space<vmem>>, vector<8x8xf32>
    %c0_20 = arith.constant 0 : index
    %c0_21 = arith.constant 0 : index
    %c0_22 = arith.constant 0 : index
    %c0_23 = arith.constant 0 : index
    %17 = vector.load %arg7[%c0_20, %c0_21, %c0_22, %c0_23] : memref<1x4x8x8xf32, #tpu.memory_space<vmem>>, vector<1x1x8x8xf32>
    %18 = vector.shape_cast %17 : vector<1x1x8x8xf32> to vector<8x8xf32>
    %19 = vector.shape_cast %16 : vector<8x8xf32> to vector<1x1x8x8xf32>
    tpu.vector_store %arg7[%c0_20, %c0_21, %c0_22, %c0_23], %19 {strides = array<i32>} : memref<1x4x8x8xf32, #tpu.memory_space<vmem>>, vector<1x1x8x8xf32>,
    %c0_24 = arith.constant 0 : index
    %c8 = arith.constant 8 : index
    %20 = vector.load %arg8[%c0_24, %c8] : memref<8x96xf32, #tpu.memory_space<vmem>>, vector<8x8xf32>
    %c0_25 = arith.constant 0 : index
    %c1 = arith.constant 1 : index
    %c0_26 = arith.constant 0 : index
    %c0_27 = arith.constant 0 : index
    %21 = vector.load %arg5[%c0_25, %c1, %c0_26, %c0_27] : memref<1x4x8x8xf32, #tpu.memory_space<vmem>>, vector<1x1x8x8xf32>
    %22 = vector.shape_cast %21 : vector<1x1x8x8xf32> to vector<8x8xf32>
    %23 = vector.shape_cast %20 : vector<8x8xf32> to vector<1x1x8x8xf32>
    tpu.vector_store %arg5[%c0_25, %c1, %c0_26, %c0_27], %23 {strides = array<i32>} : memref<1x4x8x8xf32, #tpu.memory_space<vmem>>, vector<1x1x8x8xf32>,
    %c0_28 = arith.constant 0 : index
    %c40 = arith.constant 40 : index
    %24 = vector.load %arg8[%c0_28, %c40] : memref<8x96xf32, #tpu.memory_space<vmem>>, vector<8x8xf32>
    %c0_29 = arith.constant 0 : index
    %c1_30 = arith.constant 1 : index
    %c0_31 = arith.constant 0 : index
    %c0_32 = arith.constant 0 : index
    %25 = vector.load %arg6[%c0_29, %c1_30, %c0_31, %c0_32] : memref<1x4x8x8xf32, #tpu.memory_space<vmem>>, vector<1x1x8x8xf32>
    %26 = vector.shape_cast %25 : vector<1x1x8x8xf32> to vector<8x8xf32>
    %27 = vector.shape_cast %24 : vector<8x8xf32> to vector<1x1x8x8xf32>
    tpu.vector_store %arg6[%c0_29, %c1_30, %c0_31, %c0_32], %27 {strides = array<i32>} : memref<1x4x8x8xf32, #tpu.memory_space<vmem>>, vector<1x1x8x8xf32>,
    %c0_33 = arith.constant 0 : index
    %c72 = arith.constant 72 : index
    %28 = vector.load %arg8[%c0_33, %c72] : memref<8x96xf32, #tpu.memory_space<vmem>>, vector<8x8xf32>
    %c0_34 = arith.constant 0 : index
    %c1_35 = arith.constant 1 : index
    %c0_36 = arith.constant 0 : index
    %c0_37 = arith.constant 0 : index
    %29 = vector.load %arg7[%c0_34, %c1_35, %c0_36, %c0_37] : memref<1x4x8x8xf32, #tpu.memory_space<vmem>>, vector<1x1x8x8xf32>
    %30 = vector.shape_cast %29 : vector<1x1x8x8xf32> to vector<8x8xf32>
    %31 = vector.shape_cast %28 : vector<8x8xf32> to vector<1x1x8x8xf32>
    tpu.vector_store %arg7[%c0_34, %c1_35, %c0_36, %c0_37], %31 {strides = array<i32>} : memref<1x4x8x8xf32, #tpu.memory_space<vmem>>, vector<1x1x8x8xf32>,
    %c0_38 = arith.constant 0 : index
    %c16 = arith.constant 16 : index
    %32 = vector.load %arg8[%c0_38, %c16] : memref<8x96xf32, #tpu.memory_space<vmem>>, vector<8x8xf32>
    %c0_39 = arith.constant 0 : index
    %c2 = arith.constant 2 : index
    %c0_40 = arith.constant 0 : index
    %c0_41 = arith.constant 0 : index
    %33 = vector.load %arg5[%c0_39, %c2, %c0_40, %c0_41] : memref<1x4x8x8xf32, #tpu.memory_space<vmem>>, vector<1x1x8x8xf32>
    %34 = vector.shape_cast %33 : vector<1x1x8x8xf32> to vector<8x8xf32>
    %35 = vector.shape_cast %32 : vector<8x8xf32> to vector<1x1x8x8xf32>
    tpu.vector_store %arg5[%c0_39, %c2, %c0_40, %c0_41], %35 {strides = array<i32>} : memref<1x4x8x8xf32, #tpu.memory_space<vmem>>, vector<1x1x8x8xf32>,
    %c0_42 = arith.constant 0 : index
    %c48 = arith.constant 48 : index
    %36 = vector.load %arg8[%c0_42, %c48] : memref<8x96xf32, #tpu.memory_space<vmem>>, vector<8x8xf32>
    %c0_43 = arith.constant 0 : index
    %c2_44 = arith.constant 2 : index
    %c0_45 = arith.constant 0 : index
    %c0_46 = arith.constant 0 : index
    %37 = vector.load %arg6[%c0_43, %c2_44, %c0_45, %c0_46] : memref<1x4x8x8xf32, #tpu.memory_space<vmem>>, vector<1x1x8x8xf32>
    %38 = vector.shape_cast %37 : vector<1x1x8x8xf32> to vector<8x8xf32>
    %39 = vector.shape_cast %36 : vector<8x8xf32> to vector<1x1x8x8xf32>
    tpu.vector_store %arg6[%c0_43, %c2_44, %c0_45, %c0_46], %39 {strides = array<i32>} : memref<1x4x8x8xf32, #tpu.memory_space<vmem>>, vector<1x1x8x8xf32>,
    %c0_47 = arith.constant 0 : index
    %c80 = arith.constant 80 : index
    %40 = vector.load %arg8[%c0_47, %c80] : memref<8x96xf32, #tpu.memory_space<vmem>>, vector<8x8xf32>
    %c0_48 = arith.constant 0 : index
    %c2_49 = arith.constant 2 : index
    %c0_50 = arith.constant 0 : index
    %c0_51 = arith.constant 0 : index
    %41 = vector.load %arg7[%c0_48, %c2_49, %c0_50, %c0_51] : memref<1x4x8x8xf32, #tpu.memory_space<vmem>>, vector<1x1x8x8xf32>
    %42 = vector.shape_cast %41 : vector<1x1x8x8xf32> to vector<8x8xf32>
    %43 = vector.shape_cast %40 : vector<8x8xf32> to vector<1x1x8x8xf32>
    tpu.vector_store %arg7[%c0_48, %c2_49, %c0_50, %c0_51], %43 {strides = array<i32>} : memref<1x4x8x8xf32, #tpu.memory_space<vmem>>, vector<1x1x8x8xf32>,
    %c0_52 = arith.constant 0 : index
    %c24 = arith.constant 24 : index
    %44 = vector.load %arg8[%c0_52, %c24] : memref<8x96xf32, #tpu.memory_space<vmem>>, vector<8x8xf32>
    %c0_53 = arith.constant 0 : index
    %c3 = arith.constant 3 : index
    %c0_54 = arith.constant 0 : index
    %c0_55 = arith.constant 0 : index
    %45 = vector.load %arg5[%c0_53, %c3, %c0_54, %c0_55] : memref<1x4x8x8xf32, #tpu.memory_space<vmem>>, vector<1x1x8x8xf32>
    %46 = vector.shape_cast %45 : vector<1x1x8x8xf32> to vector<8x8xf32>
    %47 = vector.shape_cast %44 : vector<8x8xf32> to vector<1x1x8x8xf32>
    tpu.vector_store %arg5[%c0_53, %c3, %c0_54, %c0_55], %47 {strides = array<i32>} : memref<1x4x8x8xf32, #tpu.memory_space<vmem>>, vector<1x1x8x8xf32>,
    %c0_56 = arith.constant 0 : index
    %c56 = arith.constant 56 : index
    %48 = vector.load %arg8[%c0_56, %c56] : memref<8x96xf32, #tpu.memory_space<vmem>>, vector<8x8xf32>
    %c0_57 = arith.constant 0 : index
    %c3_58 = arith.constant 3 : index
    %c0_59 = arith.constant 0 : index
    %c0_60 = arith.constant 0 : index
    %49 = vector.load %arg6[%c0_57, %c3_58, %c0_59, %c0_60] : memref<1x4x8x8xf32, #tpu.memory_space<vmem>>, vector<1x1x8x8xf32>
    %50 = vector.shape_cast %49 : vector<1x1x8x8xf32> to vector<8x8xf32>
    %51 = vector.shape_cast %48 : vector<8x8xf32> to vector<1x1x8x8xf32>
    tpu.vector_store %arg6[%c0_57, %c3_58, %c0_59, %c0_60], %51 {strides = array<i32>} : memref<1x4x8x8xf32, #tpu.memory_space<vmem>>, vector<1x1x8x8xf32>,
    %c0_61 = arith.constant 0 : index
    %c88 = arith.constant 88 : index
    %52 = vector.load %arg8[%c0_61, %c88] : memref<8x96xf32, #tpu.memory_space<vmem>>, vector<8x8xf32>
    %c0_62 = arith.constant 0 : index
    %c3_63 = arith.constant 3 : index
    %c0_64 = arith.constant 0 : index
    %c0_65 = arith.constant 0 : index
    %53 = vector.load %arg7[%c0_62, %c3_63, %c0_64, %c0_65] : memref<1x4x8x8xf32, #tpu.memory_space<vmem>>, vector<1x1x8x8xf32>
    %54 = vector.shape_cast %53 : vector<1x1x8x8xf32> to vector<8x8xf32>
    %55 = vector.shape_cast %52 : vector<8x8xf32> to vector<1x1x8x8xf32>
    tpu.vector_store %arg7[%c0_62, %c3_63, %c0_64, %c0_65], %55 {strides = array<i32>} : memref<1x4x8x8xf32, #tpu.memory_space<vmem>>, vector<1x1x8x8xf32>,
    return
  }
  func.func @transform_0(%arg0: i32, %arg1: i32) -> (i32, i32, i32) {
    %c0_i32 = arith.constant 0 : i32
    %c0_i32_0 = arith.constant 0 : i32
    return %arg0, %arg1, %c0_i32 : i32, i32, i32
  }
  func.func @transform_1(%arg0: i32, %arg1: i32) -> (i32, i32) {
    %c0_i32 = arith.constant 0 : i32
    %c0_i32_0 = arith.constant 0 : i32
    %c0_i32_1 = arith.constant 0 : i32
    return %c0_i32, %c0_i32_0 : i32, i32
  }
  func.func @transform_2(%arg0: i32, %arg1: i32) -> (i32, i32) {
    %c0_i32 = arith.constant 0 : i32
    %c0_i32_0 = arith.constant 0 : i32
    %c0_i32_1 = arith.constant 0 : i32
    return %c0_i32, %c0_i32_0 : i32, i32
  }
  func.func @transform_3(%arg0: i32, %arg1: i32) -> (i32, i32, i32, i32) {
    %c0_i32 = arith.constant 0 : i32
    %c0_i32_0 = arith.constant 0 : i32
    %c0_i32_1 = arith.constant 0 : i32
    return %arg0, %c0_i32, %arg1, %c0_i32_0 : i32, i32, i32, i32
  }
  func.func @transform_4(%arg0: i32, %arg1: i32) -> (i32, i32, i32, i32) {
    %c0_i32 = arith.constant 0 : i32
    %c0_i32_0 = arith.constant 0 : i32
    %c0_i32_1 = arith.constant 0 : i32
    return %arg0, %c0_i32, %arg1, %c0_i32_0 : i32, i32, i32, i32
  }
  func.func @transform_5(%arg0: i32, %arg1: i32) -> (i32, i32, i32, i32) {
    %c0_i32 = arith.constant 0 : i32
    %c0_i32_0 = arith.constant 0 : i32
    %c0_i32_1 = arith.constant 0 : i32
    return %arg0, %c0_i32, %arg1, %c0_i32_0 : i32, i32, i32, i32
  }
}

module attributes {stable_mosaic.version = 11 : i64} {
  func.func @_flash_kernel(%arg0: i32, %arg1: i32, %arg2: i32, %arg3: memref<1xi32, #tpu.memory_space<smem>>, %arg4: memref<1xi32, #tpu.memory_space<smem>>, %arg5: memref<1x1x8x8xf32, #tpu.memory_space<vmem>>, %arg6: memref<1x1x8x8xf32, #tpu.memory_space<vmem>>, %arg7: memref<1x1x8x8xf32, #tpu.memory_space<vmem>>, %arg8: memref<1x1x8x8xf32, #tpu.memory_space<vmem>>, %arg9: memref<8x8xf32, #tpu.memory_space<vmem>>, %arg10: memref<8x1xf32, #tpu.memory_space<vmem>>, %arg11: memref<8x1xf32, #tpu.memory_space<vmem>>, %arg12: memref<8x8xf32, #tpu.memory_space<vmem>>) attributes {dimension_semantics = [#tpu.dimension_semantics<parallel>, #tpu.dimension_semantics<parallel>, #tpu.dimension_semantics<arbitrary>], iteration_bounds = array<i64: 2, 4, 1>, scalar_prefetch = 2 : i64, scratch_operands = 4 : i64, tpu.core_type = #tpu.core_type<tc>, window_params = [{transform_indices = @transform_0, window_bounds = array<i64: 1, 1, 8, 8>}, {transform_indices = @transform_1, window_bounds = array<i64: 1, 1, 8, 8>}, {transform_indices = @transform_2, window_bounds = array<i64: 1, 1, 8, 8>}, {transform_indices = @transform_3, window_bounds = array<i64: 1, 1, 8, 8>}]} {
    %0 = arith.index_cast %arg2 : i32 to index
    %1 = memref.load %arg3[%0] : memref<1xi32, #tpu.memory_space<smem>>
    %2 = arith.index_cast %arg2 : i32 to index
    %3 = memref.load %arg4[%2] : memref<1xi32, #tpu.memory_space<smem>>
    %c0_i32 = arith.constant 0 : i32
    %4 = arith.cmpi eq, %3, %c0_i32 : i32
    %5 = arith.extui %4 : i1 to i32
    %c0_i32_0 = arith.constant 0 : i32
    %6 = arith.cmpi ne, %5, %c0_i32_0 : i32
    scf.if %6 {
      %c0 = arith.constant 0 : index
      %c0_3 = arith.constant 0 : index
      %c0_4 = arith.constant 0 : index
      %c0_5 = arith.constant 0 : index
      %13 = vector.load %arg5[%c0, %c0_3, %c0_4, %c0_5] : memref<1x1x8x8xf32, #tpu.memory_space<vmem>>, vector<1x1x8x8xf32>
      %14 = vector.shape_cast %13 : vector<1x1x8x8xf32> to vector<8x8xf32>
      %cst = arith.constant 0.353553385 : f32
      %15 = vector.broadcast %cst : f32 to vector<8x8xf32>
      %16 = arith.mulf %14, %15 : vector<8x8xf32>
      %c0_6 = arith.constant 0 : index
      %c0_7 = arith.constant 0 : index
      %17 = vector.load %arg9[%c0_6, %c0_7] : memref<8x8xf32, #tpu.memory_space<vmem>>, vector<8x8xf32>
      tpu.vector_store %arg9[%c0_6, %c0_7], %16 {strides = array<i32>} : memref<8x8xf32, #tpu.memory_space<vmem>>, vector<8x8xf32>,
      %cst_8 = arith.constant -1.000000e+30 : f32
      %18 = vector.broadcast %cst_8 : f32 to vector<8x1xf32>
      %c0_9 = arith.constant 0 : index
      %c0_10 = arith.constant 0 : index
      %19 = vector.load %arg10[%c0_9, %c0_10] : memref<8x1xf32, #tpu.memory_space<vmem>>, vector<8x1xf32>
      tpu.vector_store %arg10[%c0_9, %c0_10], %18 {strides = array<i32>} : memref<8x1xf32, #tpu.memory_space<vmem>>, vector<8x1xf32>,
      %cst_11 = arith.constant 0.000000e+00 : f32
      %20 = vector.broadcast %cst_11 : f32 to vector<8x1xf32>
      %c0_12 = arith.constant 0 : index
      %c0_13 = arith.constant 0 : index
      %21 = vector.load %arg11[%c0_12, %c0_13] : memref<8x1xf32, #tpu.memory_space<vmem>>, vector<8x1xf32>
      tpu.vector_store %arg11[%c0_12, %c0_13], %20 {strides = array<i32>} : memref<8x1xf32, #tpu.memory_space<vmem>>, vector<8x1xf32>,
      %cst_14 = arith.constant 0.000000e+00 : f32
      %22 = vector.broadcast %cst_14 : f32 to vector<8x8xf32>
      %c0_15 = arith.constant 0 : index
      %c0_16 = arith.constant 0 : index
      %23 = vector.load %arg12[%c0_15, %c0_16] : memref<8x8xf32, #tpu.memory_space<vmem>>, vector<8x8xf32>
      tpu.vector_store %arg12[%c0_15, %c0_16], %22 {strides = array<i32>} : memref<8x8xf32, #tpu.memory_space<vmem>>, vector<8x8xf32>,
    } else {
    }
    %7 = arith.cmpi slt, %3, %1 : i32
    %8 = arith.extui %7 : i1 to i32
    %c0_i32_1 = arith.constant 0 : i32
    %9 = arith.cmpi ne, %8, %c0_i32_1 : i32
    scf.if %9 {
      %c0 = arith.constant 0 : index
      %c0_3 = arith.constant 0 : index
      %13 = vector.load %arg9[%c0, %c0_3] : memref<8x8xf32, #tpu.memory_space<vmem>>, vector<8x8xf32>
      %c0_4 = arith.constant 0 : index
      %c0_5 = arith.constant 0 : index
      %c0_6 = arith.constant 0 : index
      %c0_7 = arith.constant 0 : index
      %14 = vector.load %arg6[%c0_4, %c0_5, %c0_6, %c0_7] : memref<1x1x8x8xf32, #tpu.memory_space<vmem>>, vector<1x1x8x8xf32>
      %15 = vector.shape_cast %14 : vector<1x1x8x8xf32> to vector<8x8xf32>
      %c0_8 = arith.constant 0 : index
      %c0_9 = arith.constant 0 : index
      %c0_10 = arith.constant 0 : index
      %c0_11 = arith.constant 0 : index
      %16 = vector.load %arg7[%c0_8, %c0_9, %c0_10, %c0_11] : memref<1x1x8x8xf32, #tpu.memory_space<vmem>>, vector<1x1x8x8xf32>
      %17 = vector.shape_cast %16 : vector<1x1x8x8xf32> to vector<8x8xf32>
      %cst = arith.constant dense<0.000000e+00> : vector<8x8xf32>
      %18 = tpu.matmul %13, %15, %cst {dimension_numbers = #tpu.dot_dimension_numbers<[1], [1], [0], [0], [0, 0, 1, 0], [], []>} : vector<8x8xf32>, vector<8x8xf32>, vector<8x8xf32> -> vector<8x8xf32>
      %c0_12 = arith.constant 0 : index
      %c0_13 = arith.constant 0 : index
      %19 = vector.load %arg10[%c0_12, %c0_13] : memref<8x1xf32, #tpu.memory_space<vmem>>, vector<8x1xf32>
      %cst_14 = arith.constant dense<0xFF800000> : vector<8xf32>
      %20 = vector.multi_reduction <maximumf>, %18, %cst_14 [1] : vector<8x8xf32> to vector<8xf32>
      %21 = vector.shape_cast %20 : vector<8xf32> to vector<8x1xf32>
      %22 = arith.maximumf %19, %21 : vector<8x1xf32>
      %23 = arith.subf %19, %22 : vector<8x1xf32>
      %24 = math.exp %23 : vector<8x1xf32>
      %25 = vector.broadcast %22 : vector<8x1xf32> to vector<8x8xf32>
      %26 = arith.subf %18, %25 : vector<8x8xf32>
      %27 = math.exp %26 : vector<8x8xf32>
      %c0_15 = arith.constant 0 : index
      %c0_16 = arith.constant 0 : index
      %28 = vector.load %arg11[%c0_15, %c0_16] : memref<8x1xf32, #tpu.memory_space<vmem>>, vector<8x1xf32>
      %29 = arith.mulf %24, %28 : vector<8x1xf32>
      %cst_17 = arith.constant dense<0.000000e+00> : vector<8xf32>
      %30 = vector.multi_reduction <add>, %27, %cst_17 [1] : vector<8x8xf32> to vector<8xf32>
      %31 = vector.shape_cast %30 : vector<8xf32> to vector<8x1xf32>
      %32 = arith.addf %29, %31 : vector<8x1xf32>
      %c0_18 = arith.constant 0 : index
      %c0_19 = arith.constant 0 : index
      %33 = vector.load %arg11[%c0_18, %c0_19] : memref<8x1xf32, #tpu.memory_space<vmem>>, vector<8x1xf32>
      tpu.vector_store %arg11[%c0_18, %c0_19], %32 {strides = array<i32>} : memref<8x1xf32, #tpu.memory_space<vmem>>, vector<8x1xf32>,
      %cst_20 = arith.constant dense<0.000000e+00> : vector<8x8xf32>
      %34 = tpu.matmul %27, %17, %cst_20 {dimension_numbers = #tpu.dot_dimension_numbers<[1], [0], [0], [1], [0, 0, 1, 1], [], []>} : vector<8x8xf32>, vector<8x8xf32>, vector<8x8xf32> -> vector<8x8xf32>
      %c0_21 = arith.constant 0 : index
      %c0_22 = arith.constant 0 : index
      %35 = vector.load %arg12[%c0_21, %c0_22] : memref<8x8xf32, #tpu.memory_space<vmem>>, vector<8x8xf32>
      %36 = vector.broadcast %24 : vector<8x1xf32> to vector<8x8xf32>
      %37 = arith.mulf %36, %35 : vector<8x8xf32>
      %38 = arith.addf %37, %34 : vector<8x8xf32>
      %c0_23 = arith.constant 0 : index
      %c0_24 = arith.constant 0 : index
      %39 = vector.load %arg12[%c0_23, %c0_24] : memref<8x8xf32, #tpu.memory_space<vmem>>, vector<8x8xf32>
      tpu.vector_store %arg12[%c0_23, %c0_24], %38 {strides = array<i32>} : memref<8x8xf32, #tpu.memory_space<vmem>>, vector<8x8xf32>,
      %c0_25 = arith.constant 0 : index
      %c0_26 = arith.constant 0 : index
      %40 = vector.load %arg10[%c0_25, %c0_26] : memref<8x1xf32, #tpu.memory_space<vmem>>, vector<8x1xf32>
      tpu.vector_store %arg10[%c0_25, %c0_26], %22 {strides = array<i32>} : memref<8x1xf32, #tpu.memory_space<vmem>>, vector<8x1xf32>,
    } else {
    }
    %10 = arith.cmpi eq, %3, %1 : i32
    %11 = arith.extui %10 : i1 to i32
    %c0_i32_2 = arith.constant 0 : i32
    %12 = arith.cmpi ne, %11, %c0_i32_2 : i32
    scf.if %12 {
      %c0 = arith.constant 0 : index
      %c0_3 = arith.constant 0 : index
      %13 = vector.load %arg9[%c0, %c0_3] : memref<8x8xf32, #tpu.memory_space<vmem>>, vector<8x8xf32>
      %c0_4 = arith.constant 0 : index
      %c0_5 = arith.constant 0 : index
      %c0_6 = arith.constant 0 : index
      %c0_7 = arith.constant 0 : index
      %14 = vector.load %arg6[%c0_4, %c0_5, %c0_6, %c0_7] : memref<1x1x8x8xf32, #tpu.memory_space<vmem>>, vector<1x1x8x8xf32>
      %15 = vector.shape_cast %14 : vector<1x1x8x8xf32> to vector<8x8xf32>
      %c0_8 = arith.constant 0 : index
      %c0_9 = arith.constant 0 : index
      %c0_10 = arith.constant 0 : index
      %c0_11 = arith.constant 0 : index
      %16 = vector.load %arg7[%c0_8, %c0_9, %c0_10, %c0_11] : memref<1x1x8x8xf32, #tpu.memory_space<vmem>>, vector<1x1x8x8xf32>
      %17 = vector.shape_cast %16 : vector<1x1x8x8xf32> to vector<8x8xf32>
      %cst = arith.constant dense<0.000000e+00> : vector<8x8xf32>
      %18 = tpu.matmul %13, %15, %cst {dimension_numbers = #tpu.dot_dimension_numbers<[1], [1], [0], [0], [0, 0, 1, 0], [], []>} : vector<8x8xf32>, vector<8x8xf32>, vector<8x8xf32> -> vector<8x8xf32>
      %19 = tpu.iota {dimensions = array<i32: 1>} : vector<8x8xi32>
      %20 = tpu.iota {dimensions = array<i32: 0>} : vector<8x8xi32>
      %21 = arith.cmpi sle, %19, %20 : vector<8x8xi32>
      %cst_12 = arith.constant -1.000000e+30 : f32
      %22 = vector.broadcast %cst_12 : f32 to vector<8x8xf32>
      %23 = arith.select %21, %18, %22 : vector<8x8xi1>, vector<8x8xf32>
      %c0_13 = arith.constant 0 : index
      %c0_14 = arith.constant 0 : index
      %24 = vector.load %arg10[%c0_13, %c0_14] : memref<8x1xf32, #tpu.memory_space<vmem>>, vector<8x1xf32>
      %cst_15 = arith.constant dense<0xFF800000> : vector<8xf32>
      %25 = vector.multi_reduction <maximumf>, %23, %cst_15 [1] : vector<8x8xf32> to vector<8xf32>
      %26 = vector.shape_cast %25 : vector<8xf32> to vector<8x1xf32>
      %27 = arith.maximumf %24, %26 : vector<8x1xf32>
      %28 = arith.subf %24, %27 : vector<8x1xf32>
      %29 = math.exp %28 : vector<8x1xf32>
      %30 = vector.broadcast %27 : vector<8x1xf32> to vector<8x8xf32>
      %31 = arith.subf %23, %30 : vector<8x8xf32>
      %32 = math.exp %31 : vector<8x8xf32>
      %c0_16 = arith.constant 0 : index
      %c0_17 = arith.constant 0 : index
      %33 = vector.load %arg11[%c0_16, %c0_17] : memref<8x1xf32, #tpu.memory_space<vmem>>, vector<8x1xf32>
      %34 = arith.mulf %29, %33 : vector<8x1xf32>
      %cst_18 = arith.constant dense<0.000000e+00> : vector<8xf32>
      %35 = vector.multi_reduction <add>, %32, %cst_18 [1] : vector<8x8xf32> to vector<8xf32>
      %36 = vector.shape_cast %35 : vector<8xf32> to vector<8x1xf32>
      %37 = arith.addf %34, %36 : vector<8x1xf32>
      %c0_19 = arith.constant 0 : index
      %c0_20 = arith.constant 0 : index
      %38 = vector.load %arg11[%c0_19, %c0_20] : memref<8x1xf32, #tpu.memory_space<vmem>>, vector<8x1xf32>
      tpu.vector_store %arg11[%c0_19, %c0_20], %37 {strides = array<i32>} : memref<8x1xf32, #tpu.memory_space<vmem>>, vector<8x1xf32>,
      %cst_21 = arith.constant dense<0.000000e+00> : vector<8x8xf32>
      %39 = tpu.matmul %32, %17, %cst_21 {dimension_numbers = #tpu.dot_dimension_numbers<[1], [0], [0], [1], [0, 0, 1, 1], [], []>} : vector<8x8xf32>, vector<8x8xf32>, vector<8x8xf32> -> vector<8x8xf32>
      %c0_22 = arith.constant 0 : index
      %c0_23 = arith.constant 0 : index
      %40 = vector.load %arg12[%c0_22, %c0_23] : memref<8x8xf32, #tpu.memory_space<vmem>>, vector<8x8xf32>
      %41 = vector.broadcast %29 : vector<8x1xf32> to vector<8x8xf32>
      %42 = arith.mulf %41, %40 : vector<8x8xf32>
      %43 = arith.addf %42, %39 : vector<8x8xf32>
      %c0_24 = arith.constant 0 : index
      %c0_25 = arith.constant 0 : index
      %44 = vector.load %arg12[%c0_24, %c0_25] : memref<8x8xf32, #tpu.memory_space<vmem>>, vector<8x8xf32>
      tpu.vector_store %arg12[%c0_24, %c0_25], %43 {strides = array<i32>} : memref<8x8xf32, #tpu.memory_space<vmem>>, vector<8x8xf32>,
      %c0_26 = arith.constant 0 : index
      %c0_27 = arith.constant 0 : index
      %45 = vector.load %arg10[%c0_26, %c0_27] : memref<8x1xf32, #tpu.memory_space<vmem>>, vector<8x1xf32>
      tpu.vector_store %arg10[%c0_26, %c0_27], %27 {strides = array<i32>} : memref<8x1xf32, #tpu.memory_space<vmem>>, vector<8x1xf32>,
      %c0_28 = arith.constant 0 : index
      %c0_29 = arith.constant 0 : index
      %46 = vector.load %arg11[%c0_28, %c0_29] : memref<8x1xf32, #tpu.memory_space<vmem>>, vector<8x1xf32>
      %47 = tpu.reciprocal %46 {approx = true} : vector<8x1xf32> -> vector<8x1xf32>
      %c0_30 = arith.constant 0 : index
      %c0_31 = arith.constant 0 : index
      %48 = vector.load %arg12[%c0_30, %c0_31] : memref<8x8xf32, #tpu.memory_space<vmem>>, vector<8x8xf32>
      %49 = vector.broadcast %47 : vector<8x1xf32> to vector<8x8xf32>
      %50 = arith.mulf %48, %49 : vector<8x8xf32>
      %c0_32 = arith.constant 0 : index
      %c0_33 = arith.constant 0 : index
      %c0_34 = arith.constant 0 : index
      %c0_35 = arith.constant 0 : index
      %51 = vector.load %arg8[%c0_32, %c0_33, %c0_34, %c0_35] : memref<1x1x8x8xf32, #tpu.memory_space<vmem>>, vector<1x1x8x8xf32>
      %52 = vector.shape_cast %51 : vector<1x1x8x8xf32> to vector<8x8xf32>
      %53 = vector.shape_cast %50 : vector<8x8xf32> to vector<1x1x8x8xf32>
      tpu.vector_store %arg8[%c0_32, %c0_33, %c0_34, %c0_35], %53 {strides = array<i32>} : memref<1x1x8x8xf32, #tpu.memory_space<vmem>>, vector<1x1x8x8xf32>,
    } else {
    }
    return
  }
  func.func @transform_0(%arg0: i32, %arg1: i32, %arg2: i32, %arg3: memref<1xi32, #tpu.memory_space<smem>>, %arg4: memref<1xi32, #tpu.memory_space<smem>>) -> (i32, i32, i32, i32) {
    %0 = arith.index_cast %arg2 : i32 to index
    %1 = memref.load %arg3[%0] : memref<1xi32, #tpu.memory_space<smem>>
    %c0_i32 = arith.constant 0 : i32
    %c0_i32_0 = arith.constant 0 : i32
    return %arg0, %arg1, %1, %c0_i32 : i32, i32, i32, i32
  }
  func.func @transform_1(%arg0: i32, %arg1: i32, %arg2: i32, %arg3: memref<1xi32, #tpu.memory_space<smem>>, %arg4: memref<1xi32, #tpu.memory_space<smem>>) -> (i32, i32, i32, i32) {
    %0 = arith.index_cast %arg2 : i32 to index
    %1 = memref.load %arg4[%0] : memref<1xi32, #tpu.memory_space<smem>>
    %c0_i32 = arith.constant 0 : i32
    %c0_i32_0 = arith.constant 0 : i32
    return %arg0, %arg1, %1, %c0_i32 : i32, i32, i32, i32
  }
  func.func @transform_2(%arg0: i32, %arg1: i32, %arg2: i32, %arg3: memref<1xi32, #tpu.memory_space<smem>>, %arg4: memref<1xi32, #tpu.memory_space<smem>>) -> (i32, i32, i32, i32) {
    %0 = arith.index_cast %arg2 : i32 to index
    %1 = memref.load %arg4[%0] : memref<1xi32, #tpu.memory_space<smem>>
    %c0_i32 = arith.constant 0 : i32
    %c0_i32_0 = arith.constant 0 : i32
    return %arg0, %arg1, %1, %c0_i32 : i32, i32, i32, i32
  }
  func.func @transform_3(%arg0: i32, %arg1: i32, %arg2: i32, %arg3: memref<1xi32, #tpu.memory_space<smem>>, %arg4: memref<1xi32, #tpu.memory_space<smem>>) -> (i32, i32, i32, i32) {
    %0 = arith.index_cast %arg2 : i32 to index
    %1 = memref.load %arg3[%0] : memref<1xi32, #tpu.memory_space<smem>>
    %c0_i32 = arith.constant 0 : i32
    %c0_i32_0 = arith.constant 0 : i32
    return %arg0, %arg1, %1, %c0_i32 : i32, i32, i32, i32
  }
}

module attributes {stable_mosaic.version = 11 : i64} {
  func.func @_proj_kernel(%arg0: i32, %arg1: i32, %arg2: memref<1x4x8x8xf32, #tpu.memory_space<vmem>>, %arg3: memref<32x32xf32, #tpu.memory_space<vmem>>, %arg4: memref<1x32xf32, #tpu.memory_space<vmem>>, %arg5: memref<1x8x32xf32, #tpu.memory_space<vmem>>, %arg6: memref<8x32xf32, #tpu.memory_space<vmem>>) attributes {dimension_semantics = [#tpu.dimension_semantics<parallel>, #tpu.dimension_semantics<parallel>], iteration_bounds = array<i64: 2, 1>, scalar_prefetch = 0 : i64, scratch_operands = 1 : i64, tpu.core_type = #tpu.core_type<tc>, window_params = [{transform_indices = @transform_0, window_bounds = array<i64: 1, 4, 8, 8>}, {pipeline_mode = #tpu.pipeline_mode<synchronous>, transform_indices = @transform_1, window_bounds = array<i64: 32, 32>}, {pipeline_mode = #tpu.pipeline_mode<synchronous>, transform_indices = @transform_2, window_bounds = array<i64: 1, 32>}, {transform_indices = @transform_3, window_bounds = array<i64: 1, 8, 32>}]} {
    %c0 = arith.constant 0 : index
    %c0_0 = arith.constant 0 : index
    %c0_1 = arith.constant 0 : index
    %c0_2 = arith.constant 0 : index
    %0 = vector.load %arg2[%c0, %c0_0, %c0_1, %c0_2] : memref<1x4x8x8xf32, #tpu.memory_space<vmem>>, vector<1x1x8x8xf32>
    %1 = vector.shape_cast %0 : vector<1x1x8x8xf32> to vector<8x8xf32>
    %c0_3 = arith.constant 0 : index
    %c0_4 = arith.constant 0 : index
    %2 = vector.load %arg6[%c0_3, %c0_4] : memref<8x32xf32, #tpu.memory_space<vmem>>, vector<8x8xf32>
    tpu.vector_store %arg6[%c0_3, %c0_4], %1 {strides = array<i32>} : memref<8x32xf32, #tpu.memory_space<vmem>>, vector<8x8xf32>,
    %c0_5 = arith.constant 0 : index
    %c1 = arith.constant 1 : index
    %c0_6 = arith.constant 0 : index
    %c0_7 = arith.constant 0 : index
    %3 = vector.load %arg2[%c0_5, %c1, %c0_6, %c0_7] : memref<1x4x8x8xf32, #tpu.memory_space<vmem>>, vector<1x1x8x8xf32>
    %4 = vector.shape_cast %3 : vector<1x1x8x8xf32> to vector<8x8xf32>
    %c0_8 = arith.constant 0 : index
    %c8 = arith.constant 8 : index
    %5 = vector.load %arg6[%c0_8, %c8] : memref<8x32xf32, #tpu.memory_space<vmem>>, vector<8x8xf32>
    tpu.vector_store %arg6[%c0_8, %c8], %4 {strides = array<i32>} : memref<8x32xf32, #tpu.memory_space<vmem>>, vector<8x8xf32>,
    %c0_9 = arith.constant 0 : index
    %c2 = arith.constant 2 : index
    %c0_10 = arith.constant 0 : index
    %c0_11 = arith.constant 0 : index
    %6 = vector.load %arg2[%c0_9, %c2, %c0_10, %c0_11] : memref<1x4x8x8xf32, #tpu.memory_space<vmem>>, vector<1x1x8x8xf32>
    %7 = vector.shape_cast %6 : vector<1x1x8x8xf32> to vector<8x8xf32>
    %c0_12 = arith.constant 0 : index
    %c16 = arith.constant 16 : index
    %8 = vector.load %arg6[%c0_12, %c16] : memref<8x32xf32, #tpu.memory_space<vmem>>, vector<8x8xf32>
    tpu.vector_store %arg6[%c0_12, %c16], %7 {strides = array<i32>} : memref<8x32xf32, #tpu.memory_space<vmem>>, vector<8x8xf32>,
    %c0_13 = arith.constant 0 : index
    %c3 = arith.constant 3 : index
    %c0_14 = arith.constant 0 : index
    %c0_15 = arith.constant 0 : index
    %9 = vector.load %arg2[%c0_13, %c3, %c0_14, %c0_15] : memref<1x4x8x8xf32, #tpu.memory_space<vmem>>, vector<1x1x8x8xf32>
    %10 = vector.shape_cast %9 : vector<1x1x8x8xf32> to vector<8x8xf32>
    %c0_16 = arith.constant 0 : index
    %c24 = arith.constant 24 : index
    %11 = vector.load %arg6[%c0_16, %c24] : memref<8x32xf32, #tpu.memory_space<vmem>>, vector<8x8xf32>
    tpu.vector_store %arg6[%c0_16, %c24], %10 {strides = array<i32>} : memref<8x32xf32, #tpu.memory_space<vmem>>, vector<8x8xf32>,
    %c0_17 = arith.constant 0 : index
    %c0_18 = arith.constant 0 : index
    %12 = vector.load %arg6[%c0_17, %c0_18] : memref<8x32xf32, #tpu.memory_space<vmem>>, vector<8x32xf32>
    %c0_19 = arith.constant 0 : index
    %c0_20 = arith.constant 0 : index
    %13 = vector.load %arg3[%c0_19, %c0_20] : memref<32x32xf32, #tpu.memory_space<vmem>>, vector<32x32xf32>
    %cst = arith.constant dense<0.000000e+00> : vector<8x32xf32>
    %14 = tpu.matmul %12, %13, %cst {dimension_numbers = #tpu.dot_dimension_numbers<[1], [0], [0], [1], [0, 0, 1, 1], [], []>} : vector<8x32xf32>, vector<32x32xf32>, vector<8x32xf32> -> vector<8x32xf32>
    %c0_21 = arith.constant 0 : index
    %c0_22 = arith.constant 0 : index
    %15 = vector.load %arg4[%c0_21, %c0_22] : memref<1x32xf32, #tpu.memory_space<vmem>>, vector<1x32xf32>
    %16 = vector.broadcast %15 : vector<1x32xf32> to vector<8x32xf32>
    %17 = arith.addf %14, %16 : vector<8x32xf32>
    %c0_23 = arith.constant 0 : index
    %c0_24 = arith.constant 0 : index
    %c0_25 = arith.constant 0 : index
    %18 = vector.load %arg5[%c0_23, %c0_24, %c0_25] : memref<1x8x32xf32, #tpu.memory_space<vmem>>, vector<1x8x32xf32>
    %19 = vector.shape_cast %18 : vector<1x8x32xf32> to vector<8x32xf32>
    %20 = vector.shape_cast %17 : vector<8x32xf32> to vector<1x8x32xf32>
    tpu.vector_store %arg5[%c0_23, %c0_24, %c0_25], %20 {strides = array<i32>} : memref<1x8x32xf32, #tpu.memory_space<vmem>>, vector<1x8x32xf32>,
    return
  }
  func.func @transform_0(%arg0: i32, %arg1: i32) -> (i32, i32, i32, i32) {
    %c0_i32 = arith.constant 0 : i32
    %c0_i32_0 = arith.constant 0 : i32
    %c0_i32_1 = arith.constant 0 : i32
    return %arg0, %c0_i32, %arg1, %c0_i32_0 : i32, i32, i32, i32
  }
  func.func @transform_1(%arg0: i32, %arg1: i32) -> (i32, i32) {
    %c0_i32 = arith.constant 0 : i32
    %c0_i32_0 = arith.constant 0 : i32
    %c0_i32_1 = arith.constant 0 : i32
    return %c0_i32, %c0_i32_0 : i32, i32
  }
  func.func @transform_2(%arg0: i32, %arg1: i32) -> (i32, i32) {
    %c0_i32 = arith.constant 0 : i32
    %c0_i32_0 = arith.constant 0 : i32
    %c0_i32_1 = arith.constant 0 : i32
    return %c0_i32, %c0_i32_0 : i32, i32
  }
  func.func @transform_3(%arg0: i32, %arg1: i32) -> (i32, i32, i32) {
    %c0_i32 = arith.constant 0 : i32
    %c0_i32_0 = arith.constant 0 : i32
    return %arg0, %arg1, %c0_i32 : i32, i32, i32
  }
}

</mosaic_0001>

<llo_original>
// kernel: self_attention.4
$region0: #{self_attention.4}
  #allocation0 [shape = 'u32[]', space=smem, size = 0x4, offset = 0x4, fixed_abs, tag = 'smem constant byte address 0x4 - core index']
  #allocation1 [shape = 'u32[144,128]{1,0:T(1,128)}', space=vmem, size = 0x12000, scoped, tag = 'internal scratch']
  #allocation2 [shape = 'f32[8,8]{1,0:T(8,128)}', space=vmem, size = 0x1000, scoped, tag = 'scratch operand']
  #allocation3 [shape = 'f32[8,1]{1,0:T(8,128)}', space=vmem, size = 0x1000, scoped, tag = 'scratch operand']
  #allocation4 [shape = 'f32[8,1]{1,0:T(8,128)}', space=vmem, size = 0x1000, scoped, tag = 'scratch operand']
  #allocation5 [shape = 'f32[8,8]{1,0:T(8,128)}', space=vmem, size = 0x1000, scoped, tag = 'scratch operand']
  #allocation6 [shape = 's32[1]{0}', space=sflag, size = 0x4, scoped, tag = 'scoped memory for self_attention.4']
  #allocation7 [shape = 's32[1]{0:T(128)S(6)}', space=smem, size = 0x200, scoped, tag = 'prefetched SMEM operand 0']
  #allocation8 [shape = 's32[1]{0:T(128)S(6)}', space=smem, size = 0x200, scoped, tag = 'prefetched SMEM operand 1']
  %s0 = inlined_call_operand.<no memory space> [shape: s32[1], index: 0, kind: input, shape index: {}, may-alias: {0,1}]
  %s1 = inlined_call_operand.<no memory space> [shape: s32[1], index: 1, kind: input, shape index: {}, may-alias: {0,1}]
  %s2 = inlined_call_operand.vmem [shape: f32[2,4,8,8], index: 2, kind: input, shape index: {}]
  %s3 = inlined_call_operand.vmem [shape: f32[2,4,8,8], index: 3, kind: input, shape index: {}]
  %s4 = inlined_call_operand.vmem [shape: f32[2,4,8,8], index: 4, kind: input, shape index: {}]
  %s5 = inlined_call_operand.vmem [shape: f32[2,4,8,8], index: 5, kind: output, shape index: {}]
  %s6 = sld [smem:[#allocation0]]
  $region57: #{self_attention.4} parent=0
    _
  %s8 = ssub.s32 1, %s6
  %s9 = scalar_select 0, %s8, %s6
  %10 = sst [smem:[#allocation7]] %s0
  %11 = sst [smem:[#allocation8]] %s1
  loop: start=0, step=1, limit=10
  $region2: #{self_attention.4} parent=0 // loop_pre_header
    _
  $region3: #{self_attention.4} parent=0 // loop_header
    %s13 = sphi 0, %s17
    %p14 = scmp.ge.s32.totalorder %s13, 10
    %s20 = sphi 0, %s39
    %s21 = sphi 0, %s35
    %s22 = sphi 0, %s31
    %s23 = sphi 0, %s20
    %s24 = sphi 0, %s21
    %s25 = sphi 0, %s22
    %s26 = sphi 0, %s23
    %s27 = sphi 0, %s24
    %s28 = sphi 0, %s25
    %s48 = sphi 0, %s50
    %s51 = sphi 0, %s48
    %s52 = sphi 0, %s51
    %s68 = sphi 0, %s52
    %s80 = sphi 0, %s82
    %s83 = sphi 0, %s80
    %s84 = sphi 0, %s83
    %s100 = sphi 0, %s84
    %s112 = sphi 0, %s114
    %s115 = sphi 0, %s112
    %s116 = sphi 0, %s115
    %s132 = sphi 0, %s116
    %s144 = sphi 0, %s146
    %s147 = sphi 0, %s144
    %s148 = sphi 0, %s147
    %s164 = sphi 0, %s148
  $region4: #{self_attention.4} parent=0 // loop_header_branch
    %16 = sbr.rel (%p14) target = $region8
  $region5: #{self_attention.4} parent=0 // loop_body
    %s18 = ssub.s32 %s13, 1
    %s19 = ssub.s32 %s13, 2
    %s29 = sadd.s32 1, %s22
    %p30 = scmp.ge.s32.totalorder %s29, 1
    %s31 = scalar_select %p30, 0, %s29
    %s32 = sadd.s32 1, %s21
    %s33 = scalar_select %p30, %s32, %s21
    %p34 = scmp.ge.s32.totalorder %s33, 4
    %s35 = scalar_select %p34, 0, %s33
    %s36 = sadd.s32 1, %s20
    %s37 = scalar_select %p34, %s36, %s20
    %p38 = scmp.ge.s32.totalorder %s37, 2
    %s39 = scalar_select %p38, 0, %s37
    %s40 = sld [smem:[#allocation7 + %s22]]
    %s41 = sld [smem:[#allocation7 + %s31]]
    %s42 = ssub.s32 %s20, %s39
    %s43 = ssub.s32 %s21, %s35
    %s44 = sor.u32 %s42, %s43
    %s45 = ssub.s32 %s40, %s41
    %s46 = sor.u32 %s44, %s45
    %p47 = scmp.eq.s32.totalorder %s46, 0
    %s49 = sadd.s32 %s48, 1
    %s50 = scalar_select %p47, %s48, %s49
    %p53 = pneg %p47
    %p54 = scmp.eq.s32.totalorder %s13, 7
    %p55 = por %p53, %p54
    %p56 = scmp.ne.s32.totalorder %s48, %s51
    %p57 = scmp.eq.s32.totalorder %s13, 0
    %p58 = por %p56, %p57
    %p59 = scmp.ne.s32.totalorder %s48, %s51
    %p60 = scmp.eq.s32.totalorder %s18, 7
    %p61 = por %p59, %p60
    %p62 = scmp.ne.s32.totalorder %s51, %s52
    %p63 = scmp.eq.s32.totalorder %s18, 0
    %p64 = por %p62, %p63
    %p65 = scmp.ne.s32.totalorder %s51, %s52
    %p66 = scmp.eq.s32.totalorder %s19, 7
    %p67 = por %p65, %p66
    %p69 = scmp.ne.s32.totalorder %s52, %s68
    %p70 = scmp.eq.s32.totalorder %s19, 0
    %p71 = por %p69, %p70
    %s72 = sld [smem:[#allocation8 + %s22]]
    %s73 = sld [smem:[#allocation8 + %s31]]
    %s74 = ssub.s32 %s20, %s39
    %s75 = ssub.s32 %s21, %s35
    %s76 = sor.u32 %s74, %s75
    %s77 = ssub.s32 %s72, %s73
    %s78 = sor.u32 %s76, %s77
    %p79 = scmp.eq.s32.totalorder %s78, 0
    %s81 = sadd.s32 %s80, 1
    %s82 = scalar_select %p79, %s80, %s81
    %p85 = pneg %p79
    %p86 = scmp.eq.s32.totalorder %s13, 7
    %p87 = por %p85, %p86
    %p88 = scmp.ne.s32.totalorder %s80, %s83
    %p89 = scmp.eq.s32.totalorder %s13, 0
    %p90 = por %p88, %p89
    %p91 = scmp.ne.s32.totalorder %s80, %s83
    %p92 = scmp.eq.s32.totalorder %s18, 7
    %p93 = por %p91, %p92
    %p94 = scmp.ne.s32.totalorder %s83, %s84
    %p95 = scmp.eq.s32.totalorder %s18, 0
    %p96 = por %p94, %p95
    %p97 = scmp.ne.s32.totalorder %s83, %s84
    %p98 = scmp.eq.s32.totalorder %s19, 7
    %p99 = por %p97, %p98
    %p101 = scmp.ne.s32.totalorder %s84, %s100
    %p102 = scmp.eq.s32.totalorder %s19, 0
    %p103 = por %p101, %p102
    %s104 = sld [smem:[#allocation8 + %s22]]
    %s105 = sld [smem:[#allocation8 + %s31]]
    %s106 = ssub.s32 %s20, %s39
    %s107 = ssub.s32 %s21, %s35
    %s108 = sor.u32 %s106, %s107
    %s109 = ssub.s32 %s104, %s105
    %s110 = sor.u32 %s108, %s109
    %p111 = scmp.eq.s32.totalorder %s110, 0
    %s113 = sadd.s32 %s112, 1
    %s114 = scalar_select %p111, %s112, %s113
    %p117 = pneg %p111
    %p118 = scmp.eq.s32.totalorder %s13, 7
    %p119 = por %p117, %p118
    %p120 = scmp.ne.s32.totalorder %s112, %s115
    %p121 = scmp.eq.s32.totalorder %s13, 0
    %p122 = por %p120, %p121
    %p123 = scmp.ne.s32.totalorder %s112, %s115
    %p124 = scmp.eq.s32.totalorder %s18, 7
    %p125 = por %p123, %p124
    %p126 = scmp.ne.s32.totalorder %s115, %s116
    %p127 = scmp.eq.s32.totalorder %s18, 0
    %p128 = por %p126, %p127
    %p129 = scmp.ne.s32.totalorder %s115, %s116
    %p130 = scmp.eq.s32.totalorder %s19, 7
    %p131 = por %p129, %p130
    %p133 = scmp.ne.s32.totalorder %s116, %s132
    %p134 = scmp.eq.s32.totalorder %s19, 0
    %p135 = por %p133, %p134
    %s136 = sld [smem:[#allocation7 + %s22]]
    %s137 = sld [smem:[#allocation7 + %s31]]
    %s138 = ssub.s32 %s20, %s39
    %s139 = ssub.s32 %s21, %s35
    %s140 = sor.u32 %s138, %s139
    %s141 = ssub.s32 %s136, %s137
    %s142 = sor.u32 %s140, %s141
    %p143 = scmp.eq.s32.totalorder %s142, 0
    %s145 = sadd.s32 %s144, 1
    %s146 = scalar_select %p143, %s144, %s145
    %p149 = pneg %p143
    %p150 = scmp.eq.s32.totalorder %s13, 7
    %p151 = por %p149, %p150
    %p152 = scmp.ne.s32.totalorder %s144, %s147
    %p153 = scmp.eq.s32.totalorder %s13, 0
    %p154 = por %p152, %p153
    %p155 = scmp.ne.s32.totalorder %s144, %s147
    %p156 = scmp.eq.s32.totalorder %s18, 7
    %p157 = por %p155, %p156
    %p158 = scmp.ne.s32.totalorder %s147, %s148
    %p159 = scmp.eq.s32.totalorder %s18, 0
    %p160 = por %p158, %p159
    %p161 = scmp.ne.s32.totalorder %s147, %s148
    %p162 = scmp.eq.s32.totalorder %s19, 7
    %p163 = por %p161, %p162
    %p165 = scmp.ne.s32.totalorder %s148, %s164
    %p166 = scmp.eq.s32.totalorder %s19, 0
    %p167 = por %p165, %p166
    %p168 = scmp.le.s32.totalorder 1, %s13
    %p169 = scmp.lt.s32.totalorder %s13, 9
    %p170 = pnand %p168, %p169
    %p171 = pneg %p170
    // Predicated region
    $region9: #{self_attention.4} parent=5 // pred_check
      _
    $region10: #{self_attention.4} parent=5 // pred_check_branch
      %173 = sbr.rel (%p170) target = $region12
    $region11: #{self_attention.4} parent=5 // pred_region
      %s174 = ssub.s32 %s13, 1
    $region12: #{self_attention.4} parent=5 // pred_fallthru
      _
    %p175 = scmp.lt.s32.totalorder %s13, 8
    // Predicated region
    $region13: #{self_attention.4} parent=5 // pred_check
      %p176 = pneg %p175
    $region14: #{self_attention.4} parent=5 // pred_check_branch
      %178 = sbr.rel (%p176) target = $region16
    $region15: #{self_attention.4} parent=5 // pred_region
      // Predicated region
      $region17: #{self_attention.4} parent=15 // pred_check
        %p179 = pneg %p58
      $region18: #{self_attention.4} parent=15 // pred_check_branch
        %181 = sbr.rel (%p179) target = $region20
      $region19: #{self_attention.4} parent=15 // pred_region
        %s182 = sld [smem:[#allocation7 + %s22]]
        %p183 = scmp.lt.s32.totalorder %s20, 1
        %s184 = scalar_select %p183, %s20, 1
        %p185 = scmp.lt.s32.totalorder %s21, 3
        %s186 = scalar_select %p185, %s21, 3
        %p187 = scmp.lt.s32.totalorder %s182, 0
        %s188 = scalar_select %p187, %s182, 0
        %s189 = sadd.s32 %s188, %s186
        %s190 = smul.addr %s184, 4
        %s191 = sadd.s32 %s189, %s190
        %s192 = smul.addr %s191, 8
        %s193 = scalar_lea.vmem %s2, %s192
        %s194 = sld [smem:[#allocation7 + %s22]]
      $region20: #{self_attention.4} parent=15 // pred_fallthru
        _
      // Predicated region
      $region21: #{self_attention.4} parent=15 // pred_check
        %p195 = pneg %p90
      $region22: #{self_attention.4} parent=15 // pred_check_branch
        %197 = sbr.rel (%p195) target = $region24
      $region23: #{self_attention.4} parent=15 // pred_region
        %s198 = sld [smem:[#allocation8 + %s22]]
        %p199 = scmp.lt.s32.totalorder %s20, 1
        %s200 = scalar_select %p199, %s20, 1
        %p201 = scmp.lt.s32.totalorder %s21, 3
        %s202 = scalar_select %p201, %s21, 3
        %p203 = scmp.lt.s32.totalorder %s198, 0
        %s204 = scalar_select %p203, %s198, 0
        %s205 = sadd.s32 %s204, %s202
        %s206 = smul.addr %s200, 4
        %s207 = sadd.s32 %s205, %s206
        %s208 = smul.addr %s207, 8
        %s209 = scalar_lea.vmem %s3, %s208
        %s210 = sld [smem:[#allocation8 + %s22]]
      $region24: #{self_attention.4} parent=15 // pred_fallthru
        _
      // Predicated region
      $region25: #{self_attention.4} parent=15 // pred_check
        %p211 = pneg %p122
      $region26: #{self_attention.4} parent=15 // pred_check_branch
        %213 = sbr.rel (%p211) target = $region28
      $region27: #{self_attention.4} parent=15 // pred_region
        %s214 = sld [smem:[#allocation8 + %s22]]
        %p215 = scmp.lt.s32.totalorder %s20, 1
        %s216 = scalar_select %p215, %s20, 1
        %p217 = scmp.lt.s32.totalorder %s21, 3
        %s218 = scalar_select %p217, %s21, 3
        %p219 = scmp.lt.s32.totalorder %s214, 0
        %s220 = scalar_select %p219, %s214, 0
        %s221 = sadd.s32 %s220, %s218
        %s222 = smul.addr %s216, 4
        %s223 = sadd.s32 %s221, %s222
        %s224 = smul.addr %s223, 8
        %s225 = scalar_lea.vmem %s4, %s224
        %s226 = sld [smem:[#allocation8 + %s22]]
      $region28: #{self_attention.4} parent=15 // pred_fallthru
        _
    $region16: #{self_attention.4} parent=5 // pred_fallthru
      _
    %p227 = scmp.le.s32.totalorder 1, %s13
    %p228 = scmp.lt.s32.totalorder %s13, 9
    %p229 = pnand %p227, %p228
    %p230 = pneg %p229
    // Predicated region
    $region29: #{self_attention.4} parent=5 // pred_check
      _
    $region30: #{self_attention.4} parent=5 // pred_check_branch
      %232 = sbr.rel (%p229) target = $region32
    $region31: #{self_attention.4} parent=5 // pred_region
      %s233 = ssub.s32 %s13, 1
      %s234 = sld [smem:[#allocation7 + %s25]]
      %p235 = scmp.lt.s32.totalorder %s23, 1
      %s236 = scalar_select %p235, %s23, 1
      %p237 = scmp.lt.s32.totalorder %s24, 3
      %s238 = scalar_select %p237, %s24, 3
      %p239 = scmp.lt.s32.totalorder %s234, 0
      %s240 = scalar_select %p239, %s234, 0
      %s241 = sadd.s32 %s240, %s238
      %s242 = smul.addr %s236, 4
      %s243 = sadd.s32 %s241, %s242
      %s244 = smul.addr %s243, 8
      %s245 = scalar_lea.vmem %s2, %s244
      %p246 = pneg %p64
      %p247 = pneg %p61
      %s248 = sld [smem:[#allocation8 + %s25]]
      %p249 = scmp.lt.s32.totalorder %s23, 1
      %s250 = scalar_select %p249, %s23, 1
      %p251 = scmp.lt.s32.totalorder %s24, 3
      %s252 = scalar_select %p251, %s24, 3
      %p253 = scmp.lt.s32.totalorder %s248, 0
      %s254 = scalar_select %p253, %s248, 0
      %s255 = sadd.s32 %s254, %s252
      %s256 = smul.addr %s250, 4
      %s257 = sadd.s32 %s255, %s256
      %s258 = smul.addr %s257, 8
      %s259 = scalar_lea.vmem %s3, %s258
      %p260 = pneg %p96
      %p261 = pneg %p93
      %s262 = sld [smem:[#allocation8 + %s25]]
      %p263 = scmp.lt.s32.totalorder %s23, 1
      %s264 = scalar_select %p263, %s23, 1
      %p265 = scmp.lt.s32.totalorder %s24, 3
      %s266 = scalar_select %p265, %s24, 3
      %p267 = scmp.lt.s32.totalorder %s262, 0
      %s268 = scalar_select %p267, %s262, 0
      %s269 = sadd.s32 %s268, %s266
      %s270 = smul.addr %s264, 4
      %s271 = sadd.s32 %s269, %s270
      %s272 = smul.addr %s271, 8
      %s273 = scalar_lea.vmem %s4, %s272
      %p274 = pneg %p128
      %p275 = pneg %p125
      %p276 = pneg %p160
      %p277 = pneg %p157
      %s278 = sld [smem:[#allocation7 + %s25]]
      %p279 = scmp.lt.s32.totalorder %s23, 1
      %s280 = scalar_select %p279, %s23, 1
      %p281 = scmp.lt.s32.totalorder %s24, 3
      %s282 = scalar_select %p281, %s24, 3
      %p283 = scmp.lt.s32.totalorder %s278, 0
      %s284 = scalar_select %p283, %s278, 0
      %s285 = sadd.s32 %s284, %s282
      %s286 = smul.addr %s280, 4
      %s287 = sadd.s32 %s285, %s286
      %s288 = smul.addr %s287, 8
      %s289 = scalar_lea.vmem %s5, %s288
      %s290 = sld [smem:[#allocation7 + %s25]]
      %p291 = scmp.lt.s32.totalorder %s23, 1
      %s292 = scalar_select %p291, %s23, 1
      %p293 = scmp.lt.s32.totalorder %s24, 3
      %s294 = scalar_select %p293, %s24, 3
      %p295 = scmp.lt.s32.totalorder %s290, 0
      %s296 = scalar_select %p295, %s290, 0
      %s297 = sadd.s32 %s296, %s294
      %s298 = smul.addr %s292, 4
      %s299 = sadd.s32 %s297, %s298
      %s300 = smul.addr %s299, 8
      %s301 = scalar_lea.vmem %s2, %s300
      %s302 = sld [smem:[#allocation7 + %s25]]
      %s303 = sld [smem:[#allocation8 + %s25]]
      %p304 = scmp.lt.s32.totalorder %s23, 1
      %s305 = scalar_select %p304, %s23, 1
      %p306 = scmp.lt.s32.totalorder %s24, 3
      %s307 = scalar_select %p306, %s24, 3
      %p308 = scmp.lt.s32.totalorder %s303, 0
      %s309 = scalar_select %p308, %s303, 0
      %s310 = sadd.s32 %s309, %s307
      %s311 = smul.addr %s305, 4
      %s312 = sadd.s32 %s310, %s311
      %s313 = smul.addr %s312, 8
      %s314 = scalar_lea.vmem %s3, %s313
      %s315 = sld [smem:[#allocation8 + %s25]]
      %s316 = sld [smem:[#allocation8 + %s25]]
      %p317 = scmp.lt.s32.totalorder %s23, 1
      %s318 = scalar_select %p317, %s23, 1
      %p319 = scmp.lt.s32.totalorder %s24, 3
      %s320 = scalar_select %p319, %s24, 3
      %p321 = scmp.lt.s32.totalorder %s316, 0
      %s322 = scalar_select %p321, %s316, 0
      %s323 = sadd.s32 %s322, %s320
      %s324 = smul.addr %s318, 4
      %s325 = sadd.s32 %s323, %s324
      %s326 = smul.addr %s325, 8
      %s327 = scalar_lea.vmem %s4, %s326
      %s328 = sld [smem:[#allocation8 + %s25]]
      %s329 = sld [smem:[#allocation7 + %s25]]
      %p330 = scmp.lt.s32.totalorder %s23, 1
      %s331 = scalar_select %p330, %s23, 1
      %p332 = scmp.lt.s32.totalorder %s24, 3
      %s333 = scalar_select %p332, %s24, 3
      %p334 = scmp.lt.s32.totalorder %s329, 0
      %s335 = scalar_select %p334, %s329, 0
      %s336 = sadd.s32 %s335, %s333
      %s337 = smul.addr %s331, 4
      %s338 = sadd.s32 %s336, %s337
      %s339 = smul.addr %s338, 8
      %s340 = scalar_lea.vmem %s5, %s339
      %s341 = sld [smem:[#allocation7 + %s25]]
      %s342 = sld [smem:[#allocation7 + %s25]]
      %s343 = sld [smem:[#allocation8 + %s25]]
      %p344 = scmp.eq.s32.totalorder %s343, 0
      // Predicated region
      $region33: #{self_attention.4} parent=31 // pred_check
        %p345 = pneg %p344
      $region34: #{self_attention.4} parent=31 // pred_check_branch
        %347 = sbr.rel (%p345) target = $region36
      $region35: #{self_attention.4} parent=31 // pred_region
        %v348 = vld [vmem:[%s301] sm:$0xff]
        %v349 = vmul.f32 %v348, 0.35355338
        %vm350 = vcmask 64512
        %351 = vst.msk [vmem:[#allocation2] sm:$0xff] %vm350, %v349
        %vm352 = vcmask 7168
        %353 = vst.msk [vmem:[#allocation3] sm:$0xff] %vm352, -1e+30
        %354 = vst.msk [vmem:[#allocation4] sm:$0xff] %vm352, 0.0
        %355 = vst.msk [vmem:[#allocation5] sm:$0xff] %vm350, 0.0
      $region36: #{self_attention.4} parent=31 // pred_fallthru
        _
      %p356 = scmp.lt.s32.totalorder %s343, %s342
      // Predicated region
      $region37: #{self_attention.4} parent=31 // pred_check
        %p357 = pneg %p356
      $region38: #{self_attention.4} parent=31 // pred_check_branch
        %359 = sbr.rel (%p357) target = $region40
      $region39: #{self_attention.4} parent=31 // pred_region
        %v360 = vld [vmem:[#allocation2] sm:$0xff]
        %v361 = vld [vmem:[%s314] sm:$0xff]
        %v362 = vld [vmem:[%s327] sm:$0xff]
        %vm363 = vcmask 64512
        %v365 = vsel %vm363, %v360, 0
        %v368 = vsel %vm363, %v361, 0
        %370 = vmatprep.subr.mxu0 0.0
        %371 = vmatpush1.xpose.msra.mxu0 %v368
        %372 = vmatprep.subr.mxu0 0.0
        %373 = vmatpush1.xpose.msra.mxu0 0.0
        %374 = vmatprep.subr.mxu0 0.0
        %375 = vmatpush1.xpose.msra.mxu0 0.0
        %376 = vmatprep.subr.mxu0 0.0
        %377 = vmatpush1.xpose.msra.mxu0 0.0
        %378 = vmatprep.subr.mxu0 0.0
        %379 = vmatpush1.xpose.msra.mxu0 0.0
        %380 = vmatprep.subr.mxu0 0.0
        %381 = vmatpush1.xpose.msra.mxu0 0.0
        %382 = vmatprep.subr.mxu0 0.0
        %383 = vmatpush1.xpose.msra.mxu0 0.0
        %384 = vmatprep.subr.mxu0 0.0
        %385 = vmatpush1.xpose.msra.mxu0 0.0
        %386 = vmatprep.subr.mxu0 0.0
        %387 = vmatpush1.xpose.msra.mxu0 0.0
        %388 = vmatprep.subr.mxu0 0.0
        %389 = vmatpush1.xpose.msra.mxu0 0.0
        %390 = vmatprep.subr.mxu0 0.0
        %391 = vmatpush1.xpose.msra.mxu0 0.0
        %392 = vmatprep.subr.mxu0 0.0
        %393 = vmatpush1.xpose.msra.mxu0 0.0
        %394 = vmatprep.subr.mxu0 0.0
        %395 = vmatpush1.xpose.msra.mxu0 0.0
        %396 = vmatprep.subr.mxu0 0.0
        %397 = vmatpush1.xpose.msra.mxu0 0.0
        %398 = vmatprep.subr.mxu0 0.0
        %399 = vmatpush1.xpose.msra.mxu0 0.0
        %400 = vmatprep.subr.mxu0 0.0
        %401 = vmatpush1.xpose.msra.mxu0 0.0
        %402 = vmatprep.subr.mxu0 0.0
        %403 = vmatpush1.xpose.msra.mxu0 0.0
        %404 = vmatprep.subr.mxu0 0.0
        %405 = vmatpush1.xpose.msra.mxu0 0.0
        %406 = vmatprep.subr.mxu0 0.0
        %407 = vmatpush1.xpose.msra.mxu0 0.0
        %408 = vmatprep.subr.mxu0 0.0
        %409 = vmatpush1.xpose.msra.mxu0 0.0
        %410 = vmatprep.subr.mxu0 0.0
        %411 = vmatpush1.xpose.msra.mxu0 0.0
        %412 = vmatprep.subr.mxu0 0.0
        %413 = vmatpush1.xpose.msra.mxu0 0.0
        %414 = vmatprep.subr.mxu0 0.0
        %415 = vmatpush1.xpose.msra.mxu0 0.0
        %416 = vmatprep.subr.mxu0 0.0
        %417 = vmatpush1.xpose.msra.mxu0 0.0
        %418 = vmatprep.subr.mxu0 0.0
        %419 = vmatpush1.xpose.msra.mxu0 0.0
        %420 = vmatprep.subr.mxu0 0.0
        %421 = vmatpush1.xpose.msra.mxu0 0.0
        %422 = vmatprep.subr.mxu0 0.0
        %423 = vmatpush1.xpose.msra.mxu0 0.0
        %424 = vmatprep.subr.mxu0 0.0
        %425 = vmatpush1.xpose.msra.mxu0 0.0
        %426 = vmatprep.subr.mxu0 0.0
        %427 = vmatpush1.xpose.msra.mxu0 0.0
        %428 = vmatprep.subr.mxu0 0.0
        %429 = vmatpush1.xpose.msra.mxu0 0.0
        %430 = vmatprep.subr.mxu0 0.0
        %431 = vmatpush1.xpose.msra.mxu0 0.0
        %432 = vmatprep.subr.mxu0 0.0
        %433 = vmatpush1.xpose.msra.mxu0 0.0
        %434 = vmatprep.mubr.f32.mxu0 0.0
        %435 = vmatmul.mubr.f32.gmra.mrb[0].mxu0 %v365
        %v436 = vpop.f32.mrb[0].mxu0
        %v437 = vadd.f32 0.0, %v436
        %v438 = vpop.f32.mrb[0].mxu0
        %439 = vdwg.mxu0
        %v440 = vld [vmem:[#allocation3] sm:$0xff]
        %v441 = vsel %vm363, %v437, -inf
        %442 = vmax.xlane.f32.xlu0 %v441
        %v443 = vpop.xlane.xlu0 %442
        %v444 = vmax.f32 %v440, %v443
        %v445 = vsub.f32 %v440, %v444
        %v446 = vmul.f32 %v445, 1.442695
        %v447 = vpow.pop %v446
        %449 = vset.pattern.permute.xlu0 0
        %450 = vperm.xlu0 %449, %v444
        %v451 = vpop.permute.xlu0 %450
        %v453 = vsub.f32 %v437, %v451
        %v454 = vmul.f32 %v453, 1.442695
        %v455 = vpow.pop %v454
        %v456 = vld [vmem:[#allocation4] sm:$0xff]
        %v457 = vmul.f32 %v447, %v456
        %v458 = vsel %vm363, %v455, 0.0
        %459 = vadd.xlane.f32.xlu0 %v458
        %v460 = vpop.xlane.xlu0 %459
        %v461 = vadd.f32 %v457, %v460
        %vm462 = vcmask 7168
        %463 = vst.msk [vmem:[#allocation4] sm:$0xff] %vm462, %v461
        %v465 = vsel %vm363, %v455, 0
        %467 = vmatprep.subr.mxu0 0.0
        %468 = vmatpush1.msra.mxu0 %v362
        %469 = vmatprep.subr.mxu0 0.0
        %470 = vmatpush1.msra.mxu0 0.0
        %471 = vmatprep.subr.mxu0 0.0
        %472 = vmatpush1.msra.mxu0 0.0
        %473 = vmatprep.subr.mxu0 0.0
        %474 = vmatpush1.msra.mxu0 0.0
        %475 = vmatprep.subr.mxu0 0.0
        %476 = vmatpush1.msra.mxu0 0.0
        %477 = vmatprep.subr.mxu0 0.0
        %478 = vmatpush1.msra.mxu0 0.0
        %479 = vmatprep.subr.mxu0 0.0
        %480 = vmatpush1.msra.mxu0 0.0
        %481 = vmatprep.subr.mxu0 0.0
        %482 = vmatpush1.msra.mxu0 0.0
        %483 = vmatprep.subr.mxu0 0.0
        %484 = vmatpush1.msra.mxu0 0.0
        %485 = vmatprep.subr.mxu0 0.0
        %486 = vmatpush1.msra.mxu0 0.0
        %487 = vmatprep.subr.mxu0 0.0
        %488 = vmatpush1.msra.mxu0 0.0
        %489 = vmatprep.subr.mxu0 0.0
        %490 = vmatpush1.msra.mxu0 0.0
        %491 = vmatprep.subr.mxu0 0.0
        %492 = vmatpush1.msra.mxu0 0.0
        %493 = vmatprep.subr.mxu0 0.0
        %494 = vmatpush1.msra.mxu0 0.0
        %495 = vmatprep.subr.mxu0 0.0
        %496 = vmatpush1.msra.mxu0 0.0
        %497 = vmatprep.subr.mxu0 0.0
        %498 = vmatpush1.msra.mxu0 0.0
        %499 = vmatprep.subr.mxu0 0.0
        %500 = vmatpush1.msra.mxu0 0.0
        %501 = vmatprep.subr.mxu0 0.0
        %502 = vmatpush1.msra.mxu0 0.0
        %503 = vmatprep.subr.mxu0 0.0
        %504 = vmatpush1.msra.mxu0 0.0
        %505 = vmatprep.subr.mxu0 0.0
        %506 = vmatpush1.msra.mxu0 0.0
        %507 = vmatprep.subr.mxu0 0.0
        %508 = vmatpush1.msra.mxu0 0.0
        %509 = vmatprep.subr.mxu0 0.0
        %510 = vmatpush1.msra.mxu0 0.0
        %511 = vmatprep.subr.mxu0 0.0
        %512 = vmatpush1.msra.mxu0 0.0
        %513 = vmatprep.subr.mxu0 0.0
        %514 = vmatpush1.msra.mxu0 0.0
        %515 = vmatprep.subr.mxu0 0.0
        %516 = vmatpush1.msra.mxu0 0.0
        %517 = vmatprep.subr.mxu0 0.0
        %518 = vmatpush1.msra.mxu0 0.0
        %519 = vmatprep.subr.mxu0 0.0
        %520 = vmatpush1.msra.mxu0 0.0
        %521 = vmatprep.subr.mxu0 0.0
        %522 = vmatpush1.msra.mxu0 0.0
        %523 = vmatprep.subr.mxu0 0.0
        %524 = vmatpush1.msra.mxu0 0.0
        %525 = vmatprep.subr.mxu0 0.0
        %526 = vmatpush1.msra.mxu0 0.0
        %527 = vmatprep.subr.mxu0 0.0
        %528 = vmatpush1.msra.mxu0 0.0
        %529 = vmatprep.subr.mxu0 0.0
        %530 = vmatpush1.msra.mxu0 0.0
        %531 = vmatprep.mubr.f32.mxu0 0.0
        %532 = vmatmul.mubr.f32.gmra.mrb[0].mxu0 %v465
        %v533 = vpop.f32.mrb[0].mxu0
        %v534 = vadd.f32 0.0, %v533
        %v535 = vpop.f32.mrb[0].mxu0
        %536 = vdwg.mxu0
        %v537 = vld [vmem:[#allocation5] sm:$0xff]
        %539 = vset.pattern.permute.xlu0 0
        %540 = vperm.xlu0 %539, %v447
        %v541 = vpop.permute.xlu0 %540
        %v543 = vmul.f32 %v541, %v537
        %v544 = vadd.f32 %v543, %v534
        %545 = vst.msk [vmem:[#allocation5] sm:$0xff] %vm363, %v544
        %546 = vst.msk [vmem:[#allocation3] sm:$0xff] %vm462, %v444
      $region40: #{self_attention.4} parent=31 // pred_fallthru
        _
      %p547 = scmp.eq.s32.totalorder %s343, %s342
      // Predicated region
      $region41: #{self_attention.4} parent=31 // pred_check
        %p548 = pneg %p547
      $region42: #{self_attention.4} parent=31 // pred_check_branch
        %550 = sbr.rel (%p548) target = $region44
      $region43: #{self_attention.4} parent=31 // pred_region
        %v551 = vld [vmem:[#allocation2] sm:$0xff]
        %v552 = vld [vmem:[%s314] sm:$0xff]
        %v553 = vld [vmem:[%s327] sm:$0xff]
        %vm554 = vcmask 64512
        %v556 = vsel %vm554, %v551, 0
        %v559 = vsel %vm554, %v552, 0
        %561 = vmatprep.subr.mxu0 0.0
        %562 = vmatpush1.xpose.msra.mxu0 %v559
        %563 = vmatprep.subr.mxu0 0.0
        %564 = vmatpush1.xpose.msra.mxu0 0.0
        %565 = vmatprep.subr.mxu0 0.0
        %566 = vmatpush1.xpose.msra.mxu0 0.0
        %567 = vmatprep.subr.mxu0 0.0
        %568 = vmatpush1.xpose.msra.mxu0 0.0
        %569 = vmatprep.subr.mxu0 0.0
        %570 = vmatpush1.xpose.msra.mxu0 0.0
        %571 = vmatprep.subr.mxu0 0.0
        %572 = vmatpush1.xpose.msra.mxu0 0.0
        %573 = vmatprep.subr.mxu0 0.0
        %574 = vmatpush1.xpose.msra.mxu0 0.0
        %575 = vmatprep.subr.mxu0 0.0
        %576 = vmatpush1.xpose.msra.mxu0 0.0
        %577 = vmatprep.subr.mxu0 0.0
        %578 = vmatpush1.xpose.msra.mxu0 0.0
        %579 = vmatprep.subr.mxu0 0.0
        %580 = vmatpush1.xpose.msra.mxu0 0.0
        %581 = vmatprep.subr.mxu0 0.0
        %582 = vmatpush1.xpose.msra.mxu0 0.0
        %583 = vmatprep.subr.mxu0 0.0
        %584 = vmatpush1.xpose.msra.mxu0 0.0
        %585 = vmatprep.subr.mxu0 0.0
        %586 = vmatpush1.xpose.msra.mxu0 0.0
        %587 = vmatprep.subr.mxu0 0.0
        %588 = vmatpush1.xpose.msra.mxu0 0.0
        %589 = vmatprep.subr.mxu0 0.0
        %590 = vmatpush1.xpose.msra.mxu0 0.0
        %591 = vmatprep.subr.mxu0 0.0
        %592 = vmatpush1.xpose.msra.mxu0 0.0
        %593 = vmatprep.subr.mxu0 0.0
        %594 = vmatpush1.xpose.msra.mxu0 0.0
        %595 = vmatprep.subr.mxu0 0.0
        %596 = vmatpush1.xpose.msra.mxu0 0.0
        %597 = vmatprep.subr.mxu0 0.0
        %598 = vmatpush1.xpose.msra.mxu0 0.0
        %599 = vmatprep.subr.mxu0 0.0
        %600 = vmatpush1.xpose.msra.mxu0 0.0
        %601 = vmatprep.subr.mxu0 0.0
        %602 = vmatpush1.xpose.msra.mxu0 0.0
        %603 = vmatprep.subr.mxu0 0.0
        %604 = vmatpush1.xpose.msra.mxu0 0.0
        %605 = vmatprep.subr.mxu0 0.0
        %606 = vmatpush1.xpose.msra.mxu0 0.0
        %607 = vmatprep.subr.mxu0 0.0
        %608 = vmatpush1.xpose.msra.mxu0 0.0
        %609 = vmatprep.subr.mxu0 0.0
        %610 = vmatpush1.xpose.msra.mxu0 0.0
        %611 = vmatprep.subr.mxu0 0.0
        %612 = vmatpush1.xpose.msra.mxu0 0.0
        %613 = vmatprep.subr.mxu0 0.0
        %614 = vmatpush1.xpose.msra.mxu0 0.0
        %615 = vmatprep.subr.mxu0 0.0
        %616 = vmatpush1.xpose.msra.mxu0 0.0
        %617 = vmatprep.subr.mxu0 0.0
        %618 = vmatpush1.xpose.msra.mxu0 0.0
        %619 = vmatprep.subr.mxu0 0.0
        %620 = vmatpush1.xpose.msra.mxu0 0.0
        %621 = vmatprep.subr.mxu0 0.0
        %622 = vmatpush1.xpose.msra.mxu0 0.0
        %623 = vmatprep.subr.mxu0 0.0
        %624 = vmatpush1.xpose.msra.mxu0 0.0
        %625 = vmatprep.mubr.f32.mxu0 0.0
        %626 = vmatmul.mubr.f32.gmra.mrb[0].mxu0 %v556
        %v627 = vpop.f32.mrb[0].mxu0
        %v628 = vadd.f32 0.0, %v627
        %v629 = vpop.f32.mrb[0].mxu0
        %630 = vdwg.mxu0
        %v631 = vlaneseq
        %v632 = vand.u32 %v631, 127
        %v633 = vlaneseq
        %v634 = vshrl.u32 %v633, 7
        %vm635 = vcmp.le.s32.totalorder %v632, %v634
        %v636 = vsel %vm635, %v628, -1e+30
        %v637 = vld [vmem:[#allocation3] sm:$0xff]
        %v638 = vsel %vm554, %v636, -inf
        %639 = vmax.xlane.f32.xlu0 %v638
        %v640 = vpop.xlane.xlu0 %639
        %v641 = vmax.f32 %v637, %v640
        %v642 = vsub.f32 %v637, %v641
        %v643 = vmul.f32 %v642, 1.442695
        %v644 = vpow.pop %v643
        %646 = vset.pattern.permute.xlu0 0
        %647 = vperm.xlu0 %646, %v641
        %v648 = vpop.permute.xlu0 %647
        %v650 = vsub.f32 %v636, %v648
        %v651 = vmul.f32 %v650, 1.442695
        %v652 = vpow.pop %v651
        %v653 = vld [vmem:[#allocation4] sm:$0xff]
        %v654 = vmul.f32 %v644, %v653
        %v655 = vsel %vm554, %v652, 0.0
        %656 = vadd.xlane.f32.xlu0 %v655
        %v657 = vpop.xlane.xlu0 %656
        %v658 = vadd.f32 %v654, %v657
        %vm659 = vcmask 7168
        %660 = vst.msk [vmem:[#allocation4] sm:$0xff] %vm659, %v658
        %v662 = vsel %vm554, %v652, 0
        %664 = vmatprep.subr.mxu0 0.0
        %665 = vmatpush1.msra.mxu0 %v553
        %666 = vmatprep.subr.mxu0 0.0
        %667 = vmatpush1.msra.mxu0 0.0
        %668 = vmatprep.subr.mxu0 0.0
        %669 = vmatpush1.msra.mxu0 0.0
        %670 = vmatprep.subr.mxu0 0.0
        %671 = vmatpush1.msra.mxu0 0.0
        %672 = vmatprep.subr.mxu0 0.0
        %673 = vmatpush1.msra.mxu0 0.0
        %674 = vmatprep.subr.mxu0 0.0
        %675 = vmatpush1.msra.mxu0 0.0
        %676 = vmatprep.subr.mxu0 0.0
        %677 = vmatpush1.msra.mxu0 0.0
        %678 = vmatprep.subr.mxu0 0.0
        %679 = vmatpush1.msra.mxu0 0.0
        %680 = vmatprep.subr.mxu0 0.0
        %681 = vmatpush1.msra.mxu0 0.0
        %682 = vmatprep.subr.mxu0 0.0
        %683 = vmatpush1.msra.mxu0 0.0
        %684 = vmatprep.subr.mxu0 0.0
        %685 = vmatpush1.msra.mxu0 0.0
        %686 = vmatprep.subr.mxu0 0.0
        %687 = vmatpush1.msra.mxu0 0.0
        %688 = vmatprep.subr.mxu0 0.0
        %689 = vmatpush1.msra.mxu0 0.0
        %690 = vmatprep.subr.mxu0 0.0
        %691 = vmatpush1.msra.mxu0 0.0
        %692 = vmatprep.subr.mxu0 0.0
        %693 = vmatpush1.msra.mxu0 0.0
        %694 = vmatprep.subr.mxu0 0.0
        %695 = vmatpush1.msra.mxu0 0.0
        %696 = vmatprep.subr.mxu0 0.0
        %697 = vmatpush1.msra.mxu0 0.0
        %698 = vmatprep.subr.mxu0 0.0
        %699 = vmatpush1.msra.mxu0 0.0
        %700 = vmatprep.subr.mxu0 0.0
        %701 = vmatpush1.msra.mxu0 0.0
        %702 = vmatprep.subr.mxu0 0.0
        %703 = vmatpush1.msra.mxu0 0.0
        %704 = vmatprep.subr.mxu0 0.0
        %705 = vmatpush1.msra.mxu0 0.0
        %706 = vmatprep.subr.mxu0 0.0
        %707 = vmatpush1.msra.mxu0 0.0
        %708 = vmatprep.subr.mxu0 0.0
        %709 = vmatpush1.msra.mxu0 0.0
        %710 = vmatprep.subr.mxu0 0.0
        %711 = vmatpush1.msra.mxu0 0.0
        %712 = vmatprep.subr.mxu0 0.0
        %713 = vmatpush1.msra.mxu0 0.0
        %714 = vmatprep.subr.mxu0 0.0
        %715 = vmatpush1.msra.mxu0 0.0
        %716 = vmatprep.subr.mxu0 0.0
        %717 = vmatpush1.msra.mxu0 0.0
        %718 = vmatprep.subr.mxu0 0.0
        %719 = vmatpush1.msra.mxu0 0.0
        %720 = vmatprep.subr.mxu0 0.0
        %721 = vmatpush1.msra.mxu0 0.0
        %722 = vmatprep.subr.mxu0 0.0
        %723 = vmatpush1.msra.mxu0 0.0
        %724 = vmatprep.subr.mxu0 0.0
        %725 = vmatpush1.msra.mxu0 0.0
        %726 = vmatprep.subr.mxu0 0.0
        %727 = vmatpush1.msra.mxu0 0.0
        %728 = vmatprep.mubr.f32.mxu0 0.0
        %729 = vmatmul.mubr.f32.gmra.mrb[0].mxu0 %v662
        %v730 = vpop.f32.mrb[0].mxu0
        %v731 = vadd.f32 0.0, %v730
        %v732 = vpop.f32.mrb[0].mxu0
        %733 = vdwg.mxu0
        %v734 = vld [vmem:[#allocation5] sm:$0xff]
        %736 = vset.pattern.permute.xlu0 0
        %737 = vperm.xlu0 %736, %v644
        %v738 = vpop.permute.xlu0 %737
        %v740 = vmul.f32 %v738, %v734
        %v741 = vadd.f32 %v740, %v731
        %742 = vst.msk [vmem:[#allocation5] sm:$0xff] %vm554, %v741
        %743 = vst.msk [vmem:[#allocation3] sm:$0xff] %vm659, %v641
        %v744 = vld [vmem:[#allocation4] sm:$0xff]
        %v745 = vrcp.pop %v744
        %v746 = vld [vmem:[#allocation5] sm:$0xff]
        %748 = vset.pattern.permute.xlu0 0
        %749 = vperm.xlu0 %748, %v745
        %v750 = vpop.permute.xlu0 %749
        %v752 = vmul.f32 %v746, %v750
        %753 = vst.msk [vmem:[%s340] sm:$0xff] %vm554, %v752
      $region44: #{self_attention.4} parent=31 // pred_fallthru
        _
      %s754 = sld [smem:[#allocation7 + %s25]]
      %p755 = scmp.lt.s32.totalorder %s23, 1
      %s756 = scalar_select %p755, %s23, 1
      %p757 = scmp.lt.s32.totalorder %s24, 3
      %s758 = scalar_select %p757, %s24, 3
      %p759 = scmp.lt.s32.totalorder %s754, 0
      %s760 = scalar_select %p759, %s754, 0
      %s761 = sadd.s32 %s760, %s758
      %s762 = smul.addr %s756, 4
      %s763 = sadd.s32 %s761, %s762
      %s764 = smul.addr %s763, 8
      %s765 = scalar_lea.vmem %s5, %s764
      // Predicated region
      $region45: #{self_attention.4} parent=31 // pred_check
        %p766 = pneg %p157
      $region46: #{self_attention.4} parent=31 // pred_check_branch
        %768 = sbr.rel (%p766) target = $region48
      $region47: #{self_attention.4} parent=31 // pred_region
        %s769 = sld [smem:[#allocation7 + %s25]]
      $region48: #{self_attention.4} parent=31 // pred_fallthru
        _
    $region32: #{self_attention.4} parent=5 // pred_fallthru
      _
    %p770 = scmp.le.s32.totalorder 2, %s13
    // Predicated region
    $region49: #{self_attention.4} parent=5 // pred_check
      %p771 = pneg %p770
    $region50: #{self_attention.4} parent=5 // pred_check_branch
      %773 = sbr.rel (%p771) target = $region52
    $region51: #{self_attention.4} parent=5 // pred_region
      %s774 = ssub.s32 %s13, 2
      // Predicated region
      $region53: #{self_attention.4} parent=51 // pred_check
        %p775 = pneg %p163
      $region54: #{self_attention.4} parent=51 // pred_check_branch
        %777 = sbr.rel (%p775) target = $region56
      $region55: #{self_attention.4} parent=51 // pred_region
        %s778 = sld [smem:[#allocation7 + %s28]]
        %p779 = scmp.lt.s32.totalorder %s26, 1
        %s780 = scalar_select %p779, %s26, 1
        %p781 = scmp.lt.s32.totalorder %s27, 3
        %s782 = scalar_select %p781, %s27, 3
        %p783 = scmp.lt.s32.totalorder %s778, 0
        %s784 = scalar_select %p783, %s778, 0
        %s785 = sadd.s32 %s784, %s782
        %s786 = smul.addr %s780, 4
        %s787 = sadd.s32 %s785, %s786
        %s788 = smul.addr %s787, 8
        %s789 = scalar_lea.vmem %s5, %s788
      $region56: #{self_attention.4} parent=51 // pred_fallthru
        _
    $region52: #{self_attention.4} parent=5 // pred_fallthru
      _
  $region6: #{self_attention.4} parent=0 // loop_footer
    %s17 = sadd.s32 1, %s13
  $region7: #{self_attention.4} parent=0 // loop_footer_branch
    %12 = sbr.rel target = $region3
  $region8: #{self_attention.4} parent=0 // loop_exit
    _

// kernel: self_attention.3
$region0: #{self_attention.3}
  #allocation0 [shape = 'u32[]', space=smem, size = 0x4, offset = 0x4, fixed_abs, tag = 'smem constant byte address 0x4 - core index']
  #allocation1 [shape = 'u32[144,128]{1,0:T(1,128)}', space=vmem, size = 0x12000, scoped, tag = 'internal scratch']
  #allocation2 [shape = 'f32[8,96]{1,0:T(8,128)}', space=vmem, size = 0x1000, scoped, tag = 'scratch operand']
  %s0 = inlined_call_operand.hbm [shape: f32[2,8,32], index: 0, kind: input, shape index: {}]
  %s1 = inlined_call_operand.hbm [shape: f32[32,96], index: 1, kind: input, shape index: {}]
  %s2 = inlined_call_operand.vmem [shape: f32[1,96], index: 2, kind: input, shape index: {}]
  %s3 = inlined_call_operand.vmem [shape: f32[2,4,8,8], index: 3, kind: output, shape index: {0}]
  %s4 = inlined_call_operand.vmem [shape: f32[2,4,8,8], index: 4, kind: output, shape index: {1}]
  %s5 = inlined_call_operand.vmem [shape: f32[2,4,8,8], index: 5, kind: output, shape index: {2}]
  %6 = xla_tuple %s3, %s4, %s5
  %s7 = sld [smem:[#allocation0]]
  $region69: #{self_attention.3} parent=0
    _
  %s9 = ssub.s32 1, %s7
  %s10 = scalar_select 0, %s9, %s7
  $region1: #{self_attention.3} parent=0
    #allocation3 [shape = 'u8[8192]{0}', space=vmem, size = 0x2000, scoped, tag = 'input window, operand 0']
    #allocation4 [shape = 's32[2]{0}', space=sflag, size = 0x8, scoped, tag = 'scoped memory for self_attention.3']
    #allocation5 [shape = 'u8[16384]{0}', space=vmem, size = 0x4000, scoped, tag = 'input window, operand 1, single buffered']
    #allocation6 [shape = 's32[1]{0}', space=sflag, size = 0x4, scoped, tag = 'scoped memory for self_attention.3']
    %11 = vsyncpa [#allocation4], 0
    %s12 = scalar_lea.sflag [#allocation4], 1
    %13 = vsyncpa %s12, 0
    %14 = vsyncpa [#allocation6], 0
    loop: start=0, step=1, limit=4
    $region2: #{self_attention.3} parent=1 // loop_pre_header
      _
    $region3: #{self_attention.3} parent=1 // loop_header
      %s16 = sphi 0, %s20
      %p17 = scmp.ge.s32.totalorder %s16, 4
      %s23 = sphi 0, %s35
      %s24 = sphi 0, %s31
      %s25 = sphi 0, %s23
      %s26 = sphi 0, %s24
      %s27 = sphi 0, %s25
      %s28 = sphi 0, %s26
      %s40 = sphi 0, %s42
      %s43 = sphi 0, %s40
      %s44 = sphi 0, %s43
      %s60 = sphi 0, %s44
      %s64 = sphi 0, %s64
      %s66 = sphi 0, %s64
      %s67 = sphi 0, %s66
      %s81 = sphi 0, %s67
      %s85 = sphi 0, %s85
      %s87 = sphi 0, %s85
      %s88 = sphi 0, %s87
      %s102 = sphi 0, %s88
      %s110 = sphi 0, %s112
      %s113 = sphi 0, %s110
      %s114 = sphi 0, %s113
      %s130 = sphi 0, %s114
      %s138 = sphi 0, %s140
      %s141 = sphi 0, %s138
      %s142 = sphi 0, %s141
      %s158 = sphi 0, %s142
      %s166 = sphi 0, %s168
      %s169 = sphi 0, %s166
      %s170 = sphi 0, %s169
      %s186 = sphi 0, %s170
    $region4: #{self_attention.3} parent=1 // loop_header_branch
      %19 = sbr.rel (%p17) target = $region8
    $region5: #{self_attention.3} parent=1 // loop_body
      %s21 = ssub.s32 %s16, 1
      %s22 = ssub.s32 %s16, 2
      %s29 = sadd.s32 1, %s24
      %p30 = scmp.ge.s32.totalorder %s29, 1
      %s31 = scalar_select %p30, 0, %s29
      %s32 = sadd.s32 1, %s23
      %s33 = scalar_select %p30, %s32, %s23
      %p34 = scmp.ge.s32.totalorder %s33, 2
      %s35 = scalar_select %p34, 0, %s33
      %s36 = ssub.s32 %s23, %s35
      %s37 = ssub.s32 %s24, %s31
      %s38 = sor.u32 %s36, %s37
      %p39 = scmp.eq.s32.totalorder %s38, 0
      %s41 = sadd.s32 %s40, 1
      %s42 = scalar_select %p39, %s40, %s41
      %p45 = pneg %p39
      %p46 = scmp.eq.s32.totalorder %s16, 1
      %p47 = por %p45, %p46
      %p48 = scmp.ne.s32.totalorder %s40, %s43
      %p49 = scmp.eq.s32.totalorder %s16, 0
      %p50 = por %p48, %p49
      %p51 = scmp.ne.s32.totalorder %s40, %s43
      %p52 = scmp.eq.s32.totalorder %s21, 1
      %p53 = por %p51, %p52
      %p54 = scmp.ne.s32.totalorder %s43, %s44
      %p55 = scmp.eq.s32.totalorder %s21, 0
      %p56 = por %p54, %p55
      %p57 = scmp.ne.s32.totalorder %s43, %s44
      %p58 = scmp.eq.s32.totalorder %s22, 1
      %p59 = por %p57, %p58
      %p61 = scmp.ne.s32.totalorder %s44, %s60
      %p62 = scmp.eq.s32.totalorder %s22, 0
      %p63 = por %p61, %p62
      %s65 = sadd.s32 %s64, 1
      %p68 = scmp.eq.s32.totalorder %s16, 1
      %p69 = scmp.ne.s32.totalorder %s64, %s66
      %p70 = scmp.eq.s32.totalorder %s16, 0
      %p71 = por %p69, %p70
      %p72 = scmp.ne.s32.totalorder %s64, %s66
      %p73 = scmp.eq.s32.totalorder %s21, 1
      %p74 = por %p72, %p73
      %p75 = scmp.ne.s32.totalorder %s66, %s67
      %p76 = scmp.eq.s32.totalorder %s21, 0
      %p77 = por %p75, %p76
      %p78 = scmp.ne.s32.totalorder %s66, %s67
      %p79 = scmp.eq.s32.totalorder %s22, 1
      %p80 = por %p78, %p79
      %p82 = scmp.ne.s32.totalorder %s67, %s81
      %p83 = scmp.eq.s32.totalorder %s22, 0
      %p84 = por %p82, %p83
      %s86 = sadd.s32 %s85, 1
      %p89 = scmp.eq.s32.totalorder %s16, 1
      %p90 = scmp.ne.s32.totalorder %s85, %s87
      %p91 = scmp.eq.s32.totalorder %s16, 0
      %p92 = por %p90, %p91
      %p93 = scmp.ne.s32.totalorder %s85, %s87
      %p94 = scmp.eq.s32.totalorder %s21, 1
      %p95 = por %p93, %p94
      %p96 = scmp.ne.s32.totalorder %s87, %s88
      %p97 = scmp.eq.s32.totalorder %s21, 0
      %p98 = por %p96, %p97
      %p99 = scmp.ne.s32.totalorder %s87, %s88
      %p100 = scmp.eq.s32.totalorder %s22, 1
      %p101 = por %p99, %p100
      %p103 = scmp.ne.s32.totalorder %s88, %s102
      %p104 = scmp.eq.s32.totalorder %s22, 0
      %p105 = por %p103, %p104
      %s106 = ssub.s32 %s23, %s35
      %s107 = ssub.s32 %s24, %s31
      %s108 = sor.u32 %s106, %s107
      %p109 = scmp.eq.s32.totalorder %s108, 0
      %s111 = sadd.s32 %s110, 1
      %s112 = scalar_select %p109, %s110, %s111
      %p115 = pneg %p109
      %p116 = scmp.eq.s32.totalorder %s16, 1
      %p117 = por %p115, %p116
      %p118 = scmp.ne.s32.totalorder %s110, %s113
      %p119 = scmp.eq.s32.totalorder %s16, 0
      %p120 = por %p118, %p119
      %p121 = scmp.ne.s32.totalorder %s110, %s113
      %p122 = scmp.eq.s32.totalorder %s21, 1
      %p123 = por %p121, %p122
      %p124 = scmp.ne.s32.totalorder %s113, %s114
      %p125 = scmp.eq.s32.totalorder %s21, 0
      %p126 = por %p124, %p125
      %p127 = scmp.ne.s32.totalorder %s113, %s114
      %p128 = scmp.eq.s32.totalorder %s22, 1
      %p129 = por %p127, %p128
      %p131 = scmp.ne.s32.totalorder %s114, %s130
      %p132 = scmp.eq.s32.totalorder %s22, 0
      %p133 = por %p131, %p132
      %s134 = ssub.s32 %s23, %s35
      %s135 = ssub.s32 %s24, %s31
      %s136 = sor.u32 %s134, %s135
      %p137 = scmp.eq.s32.totalorder %s136, 0
      %s139 = sadd.s32 %s138, 1
      %s140 = scalar_select %p137, %s138, %s139
      %p143 = pneg %p137
      %p144 = scmp.eq.s32.totalorder %s16, 1
      %p145 = por %p143, %p144
      %p146 = scmp.ne.s32.totalorder %s138, %s141
      %p147 = scmp.eq.s32.totalorder %s16, 0
      %p148 = por %p146, %p147
      %p149 = scmp.ne.s32.totalorder %s138, %s141
      %p150 = scmp.eq.s32.totalorder %s21, 1
      %p151 = por %p149, %p150
      %p152 = scmp.ne.s32.totalorder %s141, %s142
      %p153 = scmp.eq.s32.totalorder %s21, 0
      %p154 = por %p152, %p153
      %p155 = scmp.ne.s32.totalorder %s141, %s142
      %p156 = scmp.eq.s32.totalorder %s22, 1
      %p157 = por %p155, %p156
      %p159 = scmp.ne.s32.totalorder %s142, %s158
      %p160 = scmp.eq.s32.totalorder %s22, 0
      %p161 = por %p159, %p160
      %s162 = ssub.s32 %s23, %s35
      %s163 = ssub.s32 %s24, %s31
      %s164 = sor.u32 %s162, %s163
      %p165 = scmp.eq.s32.totalorder %s164, 0
      %s167 = sadd.s32 %s166, 1
      %s168 = scalar_select %p165, %s166, %s167
      %p171 = pneg %p165
      %p172 = scmp.eq.s32.totalorder %s16, 1
      %p173 = por %p171, %p172
      %p174 = scmp.ne.s32.totalorder %s166, %s169
      %p175 = scmp.eq.s32.totalorder %s16, 0
      %p176 = por %p174, %p175
      %p177 = scmp.ne.s32.totalorder %s166, %s169
      %p178 = scmp.eq.s32.totalorder %s21, 1
      %p179 = por %p177, %p178
      %p180 = scmp.ne.s32.totalorder %s169, %s170
      %p181 = scmp.eq.s32.totalorder %s21, 0
      %p182 = por %p180, %p181
      %p183 = scmp.ne.s32.totalorder %s169, %s170
      %p184 = scmp.eq.s32.totalorder %s22, 1
      %p185 = por %p183, %p184
      %p187 = scmp.ne.s32.totalorder %s170, %s186
      %p188 = scmp.eq.s32.totalorder %s22, 0
      %p189 = por %p187, %p188
      %p190 = scmp.le.s32.totalorder 1, %s16
      %p191 = scmp.lt.s32.totalorder %s16, 3
      %p192 = pnand %p190, %p191
      %p193 = pneg %p192
      // Predicated region
      $region9: #{self_attention.3} parent=5 // pred_check
        _
      $region10: #{self_attention.3} parent=5 // pred_check_branch
        %195 = sbr.rel (%p192) target = $region12
      $region11: #{self_attention.3} parent=5 // pred_region
        %s196 = ssub.s32 %s16, 1
        // Predicated region
        $region13: #{self_attention.3} parent=11 // pred_check
          %p197 = pneg %p77
        $region14: #{self_attention.3} parent=11 // pred_check_branch
          %199 = sbr.rel (%p197) target = $region16
        $region15: #{self_attention.3} parent=11 // pred_region
          %s201 = ssub.s32 512, 512
          %202 = vsyncadd [#allocation6], %s201
          %s203 = sshll.u32 [#allocation5], 4
          %s204 = int_to_ptr.vmem [resolvable:$true] %s203
          %209 = dma.hbm_to_vmem [thread:$0]  %s1, 512, %s204, [#allocation6], 128, 128, 8
        $region16: #{self_attention.3} parent=11 // pred_fallthru
          _
        // Predicated region
        $region17: #{self_attention.3} parent=11 // pred_check
          %p210 = pneg %p98
        $region18: #{self_attention.3} parent=11 // pred_check_branch
          %212 = sbr.rel (%p210) target = $region20
        $region19: #{self_attention.3} parent=11 // pred_region
          _
        $region20: #{self_attention.3} parent=11 // pred_fallthru
          _
      $region12: #{self_attention.3} parent=5 // pred_fallthru
        _
      %p213 = scmp.lt.s32.totalorder %s16, 2
      // Predicated region
      $region21: #{self_attention.3} parent=5 // pred_check
        %p214 = pneg %p213
      $region22: #{self_attention.3} parent=5 // pred_check_branch
        %216 = sbr.rel (%p214) target = $region24
      $region23: #{self_attention.3} parent=5 // pred_region
        // Predicated region
        $region25: #{self_attention.3} parent=23 // pred_check
          %p217 = pneg %p50
        $region26: #{self_attention.3} parent=23 // pred_check_branch
          %219 = sbr.rel (%p217) target = $region28
        $region27: #{self_attention.3} parent=23 // pred_region
          %s220 = sand.u32 %s40, 1
          %s221 = scalar_lea.sflag [#allocation4], %s220
          %s222 = sand.u32 %s40, 1
          %s223 = smul.addr %s222, 8
          %s224 = scalar_lea.vmem [#allocation3], %s223
          %s226 = ssub.s32 128, 128
          %227 = vsyncadd %s221, %s226
          %s228 = sadd.s32 %s24, %s23
          %s229 = smul.addr %s228, 128
          %s230 = scalar_lea.hbm %s0, %s229
          %s232 = sshll.u32 %s224, 4
          %s233 = int_to_ptr.vmem [resolvable:$true] %s232
          %235 = dma.hbm_to_vmem [thread:$0]  %s230, 128, %s233, %s221
        $region28: #{self_attention.3} parent=23 // pred_fallthru
          _
      $region24: #{self_attention.3} parent=5 // pred_fallthru
        _
      %p236 = scmp.le.s32.totalorder 1, %s16
      %p237 = scmp.lt.s32.totalorder %s16, 3
      %p238 = pnand %p236, %p237
      %p239 = pneg %p238
      // Predicated region
      $region29: #{self_attention.3} parent=5 // pred_check
        _
      $region30: #{self_attention.3} parent=5 // pred_check_branch
        %241 = sbr.rel (%p238) target = $region32
      $region31: #{self_attention.3} parent=5 // pred_region
        %s242 = ssub.s32 %s16, 1
        %s243 = sand.u32 %s43, 1
        %s244 = scalar_lea.sflag [#allocation4], %s243
        %s245 = sand.u32 %s43, 1
        %s246 = smul.addr %s245, 8
        %s247 = scalar_lea.vmem [#allocation3], %s246
        // Predicated region
        $region33: #{self_attention.3} parent=31 // pred_check
          %p248 = pneg %p56
        $region34: #{self_attention.3} parent=31 // pred_check_branch
          %250 = sbr.rel (%p248) target = $region36
        $region35: #{self_attention.3} parent=31 // pred_region
          %251 = dma.done %s244, 128
        $region36: #{self_attention.3} parent=31 // pred_fallthru
          _
        // Predicated region
        $region37: #{self_attention.3} parent=31 // pred_check
          %p252 = pneg %p77
        $region38: #{self_attention.3} parent=31 // pred_check_branch
          %254 = sbr.rel (%p252) target = $region40
        $region39: #{self_attention.3} parent=31 // pred_region
          %255 = dma.done [#allocation6], 512
        $region40: #{self_attention.3} parent=31 // pred_fallthru
          _
        %s256 = sand.u32 %s43, 1
        %s257 = scalar_lea.sflag [#allocation4], %s256
        %s258 = sand.u32 %s43, 1
        %s259 = smul.addr %s258, 8
        %s260 = scalar_lea.vmem [#allocation3], %s259
        %p261 = pneg %p56
        %p262 = pneg %p53
        %p263 = pneg %p77
        %p264 = pneg %p74
        %p265 = pneg %p98
        %p266 = pneg %p95
        %p267 = pneg %p126
        %p268 = pneg %p123
        %p269 = scmp.lt.s32.totalorder %s25, 1
        %s270 = scalar_select %p269, %s25, 1
        %p271 = scmp.lt.s32.totalorder %s26, 0
        %s272 = scalar_select %p271, %s26, 0
        %s273 = smul.addr %s270, 4
        %s274 = sadd.s32 %s272, %s273
        %s275 = smul.addr %s274, 8
        %s276 = scalar_lea.vmem %s3, %s275
        %p277 = pneg %p154
        %p278 = pneg %p151
        %p279 = scmp.lt.s32.totalorder %s25, 1
        %s280 = scalar_select %p279, %s25, 1
        %p281 = scmp.lt.s32.totalorder %s26, 0
        %s282 = scalar_select %p281, %s26, 0
        %s283 = smul.addr %s280, 4
        %s284 = sadd.s32 %s282, %s283
        %s285 = smul.addr %s284, 8
        %s286 = scalar_lea.vmem %s4, %s285
        %p287 = pneg %p182
        %p288 = pneg %p179
        %p289 = scmp.lt.s32.totalorder %s25, 1
        %s290 = scalar_select %p289, %s25, 1
        %p291 = scmp.lt.s32.totalorder %s26, 0
        %s292 = scalar_select %p291, %s26, 0
        %s293 = smul.addr %s290, 4
        %s294 = sadd.s32 %s292, %s293
        %s295 = smul.addr %s294, 8
        %s296 = scalar_lea.vmem %s5, %s295
        %p297 = scmp.lt.s32.totalorder %s25, 1
        %s298 = scalar_select %p297, %s25, 1
        %p299 = scmp.lt.s32.totalorder %s26, 0
        %s300 = scalar_select %p299, %s26, 0
        %s301 = smul.addr %s298, 4
        %s302 = sadd.s32 %s300, %s301
        %s303 = smul.addr %s302, 8
        %s304 = scalar_lea.vmem %s3, %s303
        %p305 = scmp.lt.s32.totalorder %s25, 1
        %s306 = scalar_select %p305, %s25, 1
        %p307 = scmp.lt.s32.totalorder %s26, 0
        %s308 = scalar_select %p307, %s26, 0
        %s309 = smul.addr %s306, 4
        %s310 = sadd.s32 %s308, %s309
        %s311 = smul.addr %s310, 8
        %s312 = scalar_lea.vmem %s4, %s311
        %p313 = scmp.lt.s32.totalorder %s25, 1
        %s314 = scalar_select %p313, %s25, 1
        %p315 = scmp.lt.s32.totalorder %s26, 0
        %s316 = scalar_select %p315, %s26, 0
        %s317 = smul.addr %s314, 4
        %s318 = sadd.s32 %s316, %s317
        %s319 = smul.addr %s318, 8
        %s320 = scalar_lea.vmem %s5, %s319
        %v321 = vld [vmem:[%s247] sm:$0xff]
        %v322 = vld [vmem:[#allocation5] sm:$0xff]
        %v323 = vld [vmem:[#allocation5 + $0x8] sm:$0xff]
        %v324 = vld [vmem:[#allocation5 + $0x10] sm:$0xff]
        %v325 = vld [vmem:[#allocation5 + $0x18] sm:$0xff]
        %v326 = vld [vmem:[%s2] sm:$0x1]
        %v328 = vlaneseq
        %v329 = vshrl.u32 %v328, 7
        %v330 = vsub.s32 0, %v329
        %v331 = vrot.slane %v326, %v330
        %vm333 = vcmask 261120
        %v335 = vsel %vm333, %v321, 0
        %337 = vmatprep.subr.mxu0 0.0
        %338 = vmatpush1.msra.mxu0 %v322
        %339 = vmatprep.subr.mxu0 0.0
        %340 = vmatpush1.msra.mxu0 %v323
        %341 = vmatprep.subr.mxu0 0.0
        %342 = vmatpush1.msra.mxu0 %v324
        %343 = vmatprep.subr.mxu0 0.0
        %344 = vmatpush1.msra.mxu0 %v325
        %345 = vmatprep.subr.mxu0 0.0
        %346 = vmatpush1.msra.mxu0 0.0
        %347 = vmatprep.subr.mxu0 0.0
        %348 = vmatpush1.msra.mxu0 0.0
        %349 = vmatprep.subr.mxu0 0.0
        %350 = vmatpush1.msra.mxu0 0.0
        %351 = vmatprep.subr.mxu0 0.0
        %352 = vmatpush1.msra.mxu0 0.0
        %353 = vmatprep.subr.mxu0 0.0
        %354 = vmatpush1.msra.mxu0 0.0
        %355 = vmatprep.subr.mxu0 0.0
        %356 = vmatpush1.msra.mxu0 0.0
        %357 = vmatprep.subr.mxu0 0.0
        %358 = vmatpush1.msra.mxu0 0.0
        %359 = vmatprep.subr.mxu0 0.0
        %360 = vmatpush1.msra.mxu0 0.0
        %361 = vmatprep.subr.mxu0 0.0
        %362 = vmatpush1.msra.mxu0 0.0
        %363 = vmatprep.subr.mxu0 0.0
        %364 = vmatpush1.msra.mxu0 0.0
        %365 = vmatprep.subr.mxu0 0.0
        %366 = vmatpush1.msra.mxu0 0.0
        %367 = vmatprep.subr.mxu0 0.0
        %368 = vmatpush1.msra.mxu0 0.0
        %369 = vmatprep.subr.mxu0 0.0
        %370 = vmatpush1.msra.mxu0 0.0
        %371 = vmatprep.subr.mxu0 0.0
        %372 = vmatpush1.msra.mxu0 0.0
        %373 = vmatprep.subr.mxu0 0.0
        %374 = vmatpush1.msra.mxu0 0.0
        %375 = vmatprep.subr.mxu0 0.0
        %376 = vmatpush1.msra.mxu0 0.0
        %377 = vmatprep.subr.mxu0 0.0
        %378 = vmatpush1.msra.mxu0 0.0
        %379 = vmatprep.subr.mxu0 0.0
        %380 = vmatpush1.msra.mxu0 0.0
        %381 = vmatprep.subr.mxu0 0.0
        %382 = vmatpush1.msra.mxu0 0.0
        %383 = vmatprep.subr.mxu0 0.0
        %384 = vmatpush1.msra.mxu0 0.0
        %385 = vmatprep.subr.mxu0 0.0
        %386 = vmatpush1.msra.mxu0 0.0
        %387 = vmatprep.subr.mxu0 0.0
        %388 = vmatpush1.msra.mxu0 0.0
        %389 = vmatprep.subr.mxu0 0.0
        %390 = vmatpush1.msra.mxu0 0.0
        %391 = vmatprep.subr.mxu0 0.0
        %392 = vmatpush1.msra.mxu0 0.0
        %393 = vmatprep.subr.mxu0 0.0
        %394 = vmatpush1.msra.mxu0 0.0
        %395 = vmatprep.subr.mxu0 0.0
        %396 = vmatpush1.msra.mxu0 0.0
        %397 = vmatprep.subr.mxu0 0.0
        %398 = vmatpush1.msra.mxu0 0.0
        %399 = vmatprep.subr.mxu0 0.0
        %400 = vmatpush1.msra.mxu0 0.0
        %401 = vmatprep.mubr.f32.mxu0 0.0
        %402 = vmatmul.mubr.f32.gmra.mrb[0].mxu0 %v335
        %v403 = vpop.f32.mrb[0].mxu0
        %v404 = vadd.f32 %v331, %v403
        %v405 = vpop.f32.mrb[0].mxu0
        %406 = vdwg.mxu0
        %vm407 = vcmask 785408
        %408 = vst.msk [vmem:[#allocation2] sm:$0xff] %vm407, %v404
        %v409 = vld [vmem:[#allocation2] sm:$0xff]
        %vm410 = vcmask 64512
        %411 = vst.msk [vmem:[%s304] sm:$0xff] %vm410, %v409
        %v412 = vld [vmem:[#allocation2] sm:$0xff]
        %414 = vrot.lane.b32.xlu0 %v412, 96
        %v415 = vpop.permute.xlu0 %414
        %417 = vst.msk [vmem:[%s312] sm:$0xff] %vm410, %v415
        %v418 = vld [vmem:[#allocation2] sm:$0xff]
        %420 = vrot.lane.b32.xlu0 %v418, 64
        %v421 = vpop.permute.xlu0 %420
        %423 = vst.msk [vmem:[%s320] sm:$0xff] %vm410, %v421
        %v424 = vld [vmem:[#allocation2] sm:$0xff]
        %426 = vrot.lane.b32.xlu0 %v424, 120
        %v427 = vpop.permute.xlu0 %426
        %s429 = scalar_lea.vmem %s304, 8
        %430 = vst.msk [vmem:[%s429] sm:$0xff] %vm410, %v427
        %v431 = vld [vmem:[#allocation2] sm:$0xff]
        %433 = vrot.lane.b32.xlu0 %v431, 88
        %v434 = vpop.permute.xlu0 %433
        %s436 = scalar_lea.vmem %s312, 8
        %437 = vst.msk [vmem:[%s436] sm:$0xff] %vm410, %v434
        %v438 = vld [vmem:[#allocation2] sm:$0xff]
        %440 = vrot.lane.b32.xlu0 %v438, 56
        %v441 = vpop.permute.xlu0 %440
        %s443 = scalar_lea.vmem %s320, 8
        %444 = vst.msk [vmem:[%s443] sm:$0xff] %vm410, %v441
        %v445 = vld [vmem:[#allocation2] sm:$0xff]
        %447 = vrot.lane.b32.xlu0 %v445, 112
        %v448 = vpop.permute.xlu0 %447
        %s450 = scalar_lea.vmem %s304, 16
        %451 = vst.msk [vmem:[%s450] sm:$0xff] %vm410, %v448
        %v452 = vld [vmem:[#allocation2] sm:$0xff]
        %454 = vrot.lane.b32.xlu0 %v452, 80
        %v455 = vpop.permute.xlu0 %454
        %s457 = scalar_lea.vmem %s312, 16
        %458 = vst.msk [vmem:[%s457] sm:$0xff] %vm410, %v455
        %v459 = vld [vmem:[#allocation2] sm:$0xff]
        %461 = vrot.lane.b32.xlu0 %v459, 48
        %v462 = vpop.permute.xlu0 %461
        %s464 = scalar_lea.vmem %s320, 16
        %465 = vst.msk [vmem:[%s464] sm:$0xff] %vm410, %v462
        %v466 = vld [vmem:[#allocation2] sm:$0xff]
        %468 = vrot.lane.b32.xlu0 %v466, 104
        %v469 = vpop.permute.xlu0 %468
        %s471 = scalar_lea.vmem %s304, 24
        %472 = vst.msk [vmem:[%s471] sm:$0xff] %vm410, %v469
        %v473 = vld [vmem:[#allocation2] sm:$0xff]
        %475 = vrot.lane.b32.xlu0 %v473, 72
        %v476 = vpop.permute.xlu0 %475
        %s478 = scalar_lea.vmem %s312, 24
        %479 = vst.msk [vmem:[%s478] sm:$0xff] %vm410, %v476
        %v480 = vld [vmem:[#allocation2] sm:$0xff]
        %482 = vrot.lane.b32.xlu0 %v480, 40
        %v483 = vpop.permute.xlu0 %482
        %s485 = scalar_lea.vmem %s320, 24
        %486 = vst.msk [vmem:[%s485] sm:$0xff] %vm410, %v483
        %p487 = scmp.lt.s32.totalorder %s25, 1
        %s488 = scalar_select %p487, %s25, 1
        %p489 = scmp.lt.s32.totalorder %s26, 0
        %s490 = scalar_select %p489, %s26, 0
        %s491 = smul.addr %s488, 4
        %s492 = sadd.s32 %s490, %s491
        %s493 = smul.addr %s492, 8
        %s494 = scalar_lea.vmem %s3, %s493
        %p495 = scmp.lt.s32.totalorder %s25, 1
        %s496 = scalar_select %p495, %s25, 1
        %p497 = scmp.lt.s32.totalorder %s26, 0
        %s498 = scalar_select %p497, %s26, 0
        %s499 = smul.addr %s496, 4
        %s500 = sadd.s32 %s498, %s499
        %s501 = smul.addr %s500, 8
        %s502 = scalar_lea.vmem %s4, %s501
        %p503 = scmp.lt.s32.totalorder %s25, 1
        %s504 = scalar_select %p503, %s25, 1
        %p505 = scmp.lt.s32.totalorder %s26, 0
        %s506 = scalar_select %p505, %s26, 0
        %s507 = smul.addr %s504, 4
        %s508 = sadd.s32 %s506, %s507
        %s509 = smul.addr %s508, 8
        %s510 = scalar_lea.vmem %s5, %s509
        // Predicated region
        $region41: #{self_attention.3} parent=31 // pred_check
          %p511 = pneg %p123
        $region42: #{self_attention.3} parent=31 // pred_check_branch
          %513 = sbr.rel (%p511) target = $region44
        $region43: #{self_attention.3} parent=31 // pred_region
          _
        $region44: #{self_attention.3} parent=31 // pred_fallthru
          _
        // Predicated region
        $region45: #{self_attention.3} parent=31 // pred_check
          %p514 = pneg %p151
        $region46: #{self_attention.3} parent=31 // pred_check_branch
          %516 = sbr.rel (%p514) target = $region48
        $region47: #{self_attention.3} parent=31 // pred_region
          _
        $region48: #{self_attention.3} parent=31 // pred_fallthru
          _
        // Predicated region
        $region49: #{self_attention.3} parent=31 // pred_check
          %p517 = pneg %p179
        $region50: #{self_attention.3} parent=31 // pred_check_branch
          %519 = sbr.rel (%p517) target = $region52
        $region51: #{self_attention.3} parent=31 // pred_region
          _
        $region52: #{self_attention.3} parent=31 // pred_fallthru
          _
      $region32: #{self_attention.3} parent=5 // pred_fallthru
        _
      %p520 = scmp.le.s32.totalorder 2, %s16
      // Predicated region
      $region53: #{self_attention.3} parent=5 // pred_check
        %p521 = pneg %p520
      $region54: #{self_attention.3} parent=5 // pred_check_branch
        %523 = sbr.rel (%p521) target = $region56
      $region55: #{self_attention.3} parent=5 // pred_region
        %s524 = ssub.s32 %s16, 2
        // Predicated region
        $region57: #{self_attention.3} parent=55 // pred_check
          %p525 = pneg %p129
        $region58: #{self_attention.3} parent=55 // pred_check_branch
          %527 = sbr.rel (%p525) target = $region60
        $region59: #{self_attention.3} parent=55 // pred_region
          %p528 = scmp.lt.s32.totalorder %s27, 1
          %s529 = scalar_select %p528, %s27, 1
          %p530 = scmp.lt.s32.totalorder %s28, 0
          %s531 = scalar_select %p530, %s28, 0
          %s532 = smul.addr %s529, 4
          %s533 = sadd.s32 %s531, %s532
          %s534 = smul.addr %s533, 8
          %s535 = scalar_lea.vmem %s3, %s534
        $region60: #{self_attention.3} parent=55 // pred_fallthru
          _
        // Predicated region
        $region61: #{self_attention.3} parent=55 // pred_check
          %p536 = pneg %p157
        $region62: #{self_attention.3} parent=55 // pred_check_branch
          %538 = sbr.rel (%p536) target = $region64
        $region63: #{self_attention.3} parent=55 // pred_region
          %p539 = scmp.lt.s32.totalorder %s27, 1
          %s540 = scalar_select %p539, %s27, 1
          %p541 = scmp.lt.s32.totalorder %s28, 0
          %s542 = scalar_select %p541, %s28, 0
          %s543 = smul.addr %s540, 4
          %s544 = sadd.s32 %s542, %s543
          %s545 = smul.addr %s544, 8
          %s546 = scalar_lea.vmem %s4, %s545
        $region64: #{self_attention.3} parent=55 // pred_fallthru
          _
        // Predicated region
        $region65: #{self_attention.3} parent=55 // pred_check
          %p547 = pneg %p185
        $region66: #{self_attention.3} parent=55 // pred_check_branch
          %549 = sbr.rel (%p547) target = $region68
        $region67: #{self_attention.3} parent=55 // pred_region
          %p550 = scmp.lt.s32.totalorder %s27, 1
          %s551 = scalar_select %p550, %s27, 1
          %p552 = scmp.lt.s32.totalorder %s28, 0
          %s553 = scalar_select %p552, %s28, 0
          %s554 = smul.addr %s551, 4
          %s555 = sadd.s32 %s553, %s554
          %s556 = smul.addr %s555, 8
          %s557 = scalar_lea.vmem %s5, %s556
        $region68: #{self_attention.3} parent=55 // pred_fallthru
          _
      $region56: #{self_attention.3} parent=5 // pred_fallthru
        _
    $region6: #{self_attention.3} parent=1 // loop_footer
      %s20 = sadd.s32 1, %s16
    $region7: #{self_attention.3} parent=1 // loop_footer_branch
      %15 = sbr.rel target = $region3
    $region8: #{self_attention.3} parent=1 // loop_exit
      _
    %558 = vsyncpa [#allocation4], 1
    %s559 = scalar_lea.sflag [#allocation4], 1
    %560 = vsyncpa %s559, 1
    %561 = vsyncpa [#allocation6], 1

// kernel: self_attention.5
$region0: #{self_attention.5}
  #allocation0 [shape = 'u32[]', space=smem, size = 0x4, offset = 0x4, fixed_abs, tag = 'smem constant byte address 0x4 - core index']
  #allocation1 [shape = 'u32[144,128]{1,0:T(1,128)}', space=vmem, size = 0x12000, scoped, tag = 'internal scratch']
  #allocation2 [shape = 'f32[8,32]{1,0:T(8,128)}', space=vmem, size = 0x1000, scoped, tag = 'scratch operand']
  %s0 = inlined_call_operand.vmem [shape: f32[2,4,8,8], index: 0, kind: input, shape index: {}]
  %s1 = inlined_call_operand.vmem [shape: f32[32,32], index: 1, kind: input, shape index: {}]
  %s2 = inlined_call_operand.vmem [shape: f32[1,32], index: 2, kind: input, shape index: {}]
  %s3 = inlined_call_operand.hbm [shape: f32[2,8,32], index: 3, kind: output, shape index: {}]
  %s4 = sld [smem:[#allocation0]]
  $region45: #{self_attention.5} parent=0
    _
  %s6 = ssub.s32 1, %s4
  %s7 = scalar_select 0, %s6, %s4
  $region1: #{self_attention.5} parent=0
    #allocation3 [shape = 'u8[8192]{0}', space=vmem, size = 0x2000, scoped, tag = 'output window, operand 0']
    #allocation4 [shape = 's32[2]{0}', space=sflag, size = 0x8, scoped, tag = 'scoped memory for self_attention.5']
    %8 = vsyncpa [#allocation4], 0
    %s9 = scalar_lea.sflag [#allocation4], 1
    %10 = vsyncpa %s9, 0
    loop: start=0, step=1, limit=4
    $region2: #{self_attention.5} parent=1 // loop_pre_header
      _
    $region3: #{self_attention.5} parent=1 // loop_header
      %s12 = sphi 0, %s16
      %p13 = scmp.ge.s32.totalorder %s12, 4
      %s19 = sphi 0, %s31
      %s20 = sphi 0, %s27
      %s21 = sphi 0, %s19
      %s22 = sphi 0, %s20
      %s23 = sphi 0, %s21
      %s24 = sphi 0, %s22
      %s36 = sphi 0, %s38
      %s39 = sphi 0, %s36
      %s40 = sphi 0, %s39
      %s56 = sphi 0, %s40
      %s60 = sphi 0, %s60
      %s62 = sphi 0, %s60
      %s63 = sphi 0, %s62
      %s77 = sphi 0, %s63
      %s81 = sphi 0, %s81
      %s83 = sphi 0, %s81
      %s84 = sphi 0, %s83
      %s98 = sphi 0, %s84
      %s106 = sphi 0, %s108
      %s109 = sphi 0, %s106
      %s110 = sphi 0, %s109
      %s126 = sphi 0, %s110
    $region4: #{self_attention.5} parent=1 // loop_header_branch
      %15 = sbr.rel (%p13) target = $region8
    $region5: #{self_attention.5} parent=1 // loop_body
      %s17 = ssub.s32 %s12, 1
      %s18 = ssub.s32 %s12, 2
      %s25 = sadd.s32 1, %s20
      %p26 = scmp.ge.s32.totalorder %s25, 1
      %s27 = scalar_select %p26, 0, %s25
      %s28 = sadd.s32 1, %s19
      %s29 = scalar_select %p26, %s28, %s19
      %p30 = scmp.ge.s32.totalorder %s29, 2
      %s31 = scalar_select %p30, 0, %s29
      %s32 = ssub.s32 %s19, %s31
      %s33 = ssub.s32 %s20, %s27
      %s34 = sor.u32 %s32, %s33
      %p35 = scmp.eq.s32.totalorder %s34, 0
      %s37 = sadd.s32 %s36, 1
      %s38 = scalar_select %p35, %s36, %s37
      %p41 = pneg %p35
      %p42 = scmp.eq.s32.totalorder %s12, 1
      %p43 = por %p41, %p42
      %p44 = scmp.ne.s32.totalorder %s36, %s39
      %p45 = scmp.eq.s32.totalorder %s12, 0
      %p46 = por %p44, %p45
      %p47 = scmp.ne.s32.totalorder %s36, %s39
      %p48 = scmp.eq.s32.totalorder %s17, 1
      %p49 = por %p47, %p48
      %p50 = scmp.ne.s32.totalorder %s39, %s40
      %p51 = scmp.eq.s32.totalorder %s17, 0
      %p52 = por %p50, %p51
      %p53 = scmp.ne.s32.totalorder %s39, %s40
      %p54 = scmp.eq.s32.totalorder %s18, 1
      %p55 = por %p53, %p54
      %p57 = scmp.ne.s32.totalorder %s40, %s56
      %p58 = scmp.eq.s32.totalorder %s18, 0
      %p59 = por %p57, %p58
      %s61 = sadd.s32 %s60, 1
      %p64 = scmp.eq.s32.totalorder %s12, 1
      %p65 = scmp.ne.s32.totalorder %s60, %s62
      %p66 = scmp.eq.s32.totalorder %s12, 0
      %p67 = por %p65, %p66
      %p68 = scmp.ne.s32.totalorder %s60, %s62
      %p69 = scmp.eq.s32.totalorder %s17, 1
      %p70 = por %p68, %p69
      %p71 = scmp.ne.s32.totalorder %s62, %s63
      %p72 = scmp.eq.s32.totalorder %s17, 0
      %p73 = por %p71, %p72
      %p74 = scmp.ne.s32.totalorder %s62, %s63
      %p75 = scmp.eq.s32.totalorder %s18, 1
      %p76 = por %p74, %p75
      %p78 = scmp.ne.s32.totalorder %s63, %s77
      %p79 = scmp.eq.s32.totalorder %s18, 0
      %p80 = por %p78, %p79
      %s82 = sadd.s32 %s81, 1
      %p85 = scmp.eq.s32.totalorder %s12, 1
      %p86 = scmp.ne.s32.totalorder %s81, %s83
      %p87 = scmp.eq.s32.totalorder %s12, 0
      %p88 = por %p86, %p87
      %p89 = scmp.ne.s32.totalorder %s81, %s83
      %p90 = scmp.eq.s32.totalorder %s17, 1
      %p91 = por %p89, %p90
      %p92 = scmp.ne.s32.totalorder %s83, %s84
      %p93 = scmp.eq.s32.totalorder %s17, 0
      %p94 = por %p92, %p93
      %p95 = scmp.ne.s32.totalorder %s83, %s84
      %p96 = scmp.eq.s32.totalorder %s18, 1
      %p97 = por %p95, %p96
      %p99 = scmp.ne.s32.totalorder %s84, %s98
      %p100 = scmp.eq.s32.totalorder %s18, 0
      %p101 = por %p99, %p100
      %s102 = ssub.s32 %s19, %s31
      %s103 = ssub.s32 %s20, %s27
      %s104 = sor.u32 %s102, %s103
      %p105 = scmp.eq.s32.totalorder %s104, 0
      %s107 = sadd.s32 %s106, 1
      %s108 = scalar_select %p105, %s106, %s107
      %p111 = pneg %p105
      %p112 = scmp.eq.s32.totalorder %s12, 1
      %p113 = por %p111, %p112
      %p114 = scmp.ne.s32.totalorder %s106, %s109
      %p115 = scmp.eq.s32.totalorder %s12, 0
      %p116 = por %p114, %p115
      %p117 = scmp.ne.s32.totalorder %s106, %s109
      %p118 = scmp.eq.s32.totalorder %s17, 1
      %p119 = por %p117, %p118
      %p120 = scmp.ne.s32.totalorder %s109, %s110
      %p121 = scmp.eq.s32.totalorder %s17, 0
      %p122 = por %p120, %p121
      %p123 = scmp.ne.s32.totalorder %s109, %s110
      %p124 = scmp.eq.s32.totalorder %s18, 1
      %p125 = por %p123, %p124
      %p127 = scmp.ne.s32.totalorder %s110, %s126
      %p128 = scmp.eq.s32.totalorder %s18, 0
      %p129 = por %p127, %p128
      %p130 = scmp.le.s32.totalorder 1, %s12
      %p131 = scmp.lt.s32.totalorder %s12, 3
      %p132 = pnand %p130, %p131
      %p133 = pneg %p132
      // Predicated region
      $region9: #{self_attention.5} parent=5 // pred_check
        _
      $region10: #{self_attention.5} parent=5 // pred_check_branch
        %135 = sbr.rel (%p132) target = $region12
      $region11: #{self_attention.5} parent=5 // pred_region
        %s136 = ssub.s32 %s12, 1
        // Predicated region
        $region13: #{self_attention.5} parent=11 // pred_check
          %p137 = pneg %p73
        $region14: #{self_attention.5} parent=11 // pred_check_branch
          %139 = sbr.rel (%p137) target = $region16
        $region15: #{self_attention.5} parent=11 // pred_region
          _
        $region16: #{self_attention.5} parent=11 // pred_fallthru
          _
        // Predicated region
        $region17: #{self_attention.5} parent=11 // pred_check
          %p140 = pneg %p94
        $region18: #{self_attention.5} parent=11 // pred_check_branch
          %142 = sbr.rel (%p140) target = $region20
        $region19: #{self_attention.5} parent=11 // pred_region
          _
        $region20: #{self_attention.5} parent=11 // pred_fallthru
          _
      $region12: #{self_attention.5} parent=5 // pred_fallthru
        _
      %p143 = scmp.lt.s32.totalorder %s12, 2
      // Predicated region
      $region21: #{self_attention.5} parent=5 // pred_check
        %p144 = pneg %p143
      $region22: #{self_attention.5} parent=5 // pred_check_branch
        %146 = sbr.rel (%p144) target = $region24
      $region23: #{self_attention.5} parent=5 // pred_region
        // Predicated region
        $region25: #{self_attention.5} parent=23 // pred_check
          %p147 = pneg %p46
        $region26: #{self_attention.5} parent=23 // pred_check_branch
          %149 = sbr.rel (%p147) target = $region28
        $region27: #{self_attention.5} parent=23 // pred_region
          %p150 = scmp.lt.s32.totalorder %s19, 1
          %s151 = scalar_select %p150, %s19, 1
          %p152 = scmp.lt.s32.totalorder %s20, 0
          %s153 = scalar_select %p152, %s20, 0
          %s154 = smul.addr %s151, 4
          %s155 = sadd.s32 %s153, %s154
          %s156 = smul.addr %s155, 8
          %s157 = scalar_lea.vmem %s0, %s156
        $region28: #{self_attention.5} parent=23 // pred_fallthru
          _
      $region24: #{self_attention.5} parent=5 // pred_fallthru
        _
      %p158 = scmp.le.s32.totalorder 1, %s12
      %p159 = scmp.lt.s32.totalorder %s12, 3
      %p160 = pnand %p158, %p159
      %p161 = pneg %p160
      // Predicated region
      $region29: #{self_attention.5} parent=5 // pred_check
        _
      $region30: #{self_attention.5} parent=5 // pred_check_branch
        %163 = sbr.rel (%p160) target = $region32
      $region31: #{self_attention.5} parent=5 // pred_region
        %s164 = ssub.s32 %s12, 1
        %p165 = scmp.lt.s32.totalorder %s21, 1
        %s166 = scalar_select %p165, %s21, 1
        %p167 = scmp.lt.s32.totalorder %s22, 0
        %s168 = scalar_select %p167, %s22, 0
        %s169 = smul.addr %s166, 4
        %s170 = sadd.s32 %s168, %s169
        %s171 = smul.addr %s170, 8
        %s172 = scalar_lea.vmem %s0, %s171
        %p173 = pneg %p52
        %p174 = pneg %p49
        %p175 = pneg %p73
        %p176 = pneg %p70
        %p177 = pneg %p94
        %p178 = pneg %p91
        %p179 = pneg %p122
        %p180 = pneg %p119
        %s181 = sand.u32 %s109, 1
        %s182 = scalar_lea.sflag [#allocation4], %s181
        %s183 = sand.u32 %s109, 1
        %s184 = smul.addr %s183, 8
        %s185 = scalar_lea.vmem [#allocation3], %s184
        %p186 = scmp.lt.s32.totalorder %s21, 1
        %s187 = scalar_select %p186, %s21, 1
        %p188 = scmp.lt.s32.totalorder %s22, 0
        %s189 = scalar_select %p188, %s22, 0
        %s190 = smul.addr %s187, 4
        %s191 = sadd.s32 %s189, %s190
        %s192 = smul.addr %s191, 8
        %s193 = scalar_lea.vmem %s0, %s192
        %v194 = vld [vmem:[%s193] sm:$0xff]
        %vm195 = vcmask 64512
        %196 = vst.msk [vmem:[#allocation2] sm:$0xff] %vm195, %v194
        %s197 = scalar_lea.vmem %s193, 8
        %v198 = vld [vmem:[%s197] sm:$0xff]
        %200 = vrot.lane.b32.xlu0 %v198, 8
        %v201 = vpop.permute.xlu0 %200
        %vm203 = vcmask 130112
        %204 = vst.msk [vmem:[#allocation2] sm:$0xff] %vm203, %v201
        %s205 = scalar_lea.vmem %s193, 16
        %v206 = vld [vmem:[%s205] sm:$0xff]
        %208 = vrot.lane.b32.xlu0 %v206, 16
        %v209 = vpop.permute.xlu0 %208
        %vm211 = vcmask 195712
        %212 = vst.msk [vmem:[#allocation2] sm:$0xff] %vm211, %v209
        %s213 = scalar_lea.vmem %s193, 24
        %v214 = vld [vmem:[%s213] sm:$0xff]
        %216 = vrot.lane.b32.xlu0 %v214, 24
        %v217 = vpop.permute.xlu0 %216
        %vm219 = vcmask 261312
        %220 = vst.msk [vmem:[#allocation2] sm:$0xff] %vm219, %v217
        %v221 = vld [vmem:[#allocation2] sm:$0xff]
        %v222 = vld [vmem:[%s1] sm:$0xff]
        %v223 = vld [vmem:[%s1 + $0x8] sm:$0xff]
        %v224 = vld [vmem:[%s1 + $0x10] sm:$0xff]
        %v225 = vld [vmem:[%s1 + $0x18] sm:$0xff]
        %v226 = vld [vmem:[%s2] sm:$0x1]
        %v228 = vlaneseq
        %v229 = vshrl.u32 %v228, 7
        %v230 = vsub.s32 0, %v229
        %v231 = vrot.slane %v226, %v230
        %vm233 = vcmask 261120
        %v235 = vsel %vm233, %v221, 0
        %237 = vmatprep.subr.mxu0 0.0
        %238 = vmatpush1.msra.mxu0 %v222
        %239 = vmatprep.subr.mxu0 0.0
        %240 = vmatpush1.msra.mxu0 %v223
        %241 = vmatprep.subr.mxu0 0.0
        %242 = vmatpush1.msra.mxu0 %v224
        %243 = vmatprep.subr.mxu0 0.0
        %244 = vmatpush1.msra.mxu0 %v225
        %245 = vmatprep.subr.mxu0 0.0
        %246 = vmatpush1.msra.mxu0 0.0
        %247 = vmatprep.subr.mxu0 0.0
        %248 = vmatpush1.msra.mxu0 0.0
        %249 = vmatprep.subr.mxu0 0.0
        %250 = vmatpush1.msra.mxu0 0.0
        %251 = vmatprep.subr.mxu0 0.0
        %252 = vmatpush1.msra.mxu0 0.0
        %253 = vmatprep.subr.mxu0 0.0
        %254 = vmatpush1.msra.mxu0 0.0
        %255 = vmatprep.subr.mxu0 0.0
        %256 = vmatpush1.msra.mxu0 0.0
        %257 = vmatprep.subr.mxu0 0.0
        %258 = vmatpush1.msra.mxu0 0.0
        %259 = vmatprep.subr.mxu0 0.0
        %260 = vmatpush1.msra.mxu0 0.0
        %261 = vmatprep.subr.mxu0 0.0
        %262 = vmatpush1.msra.mxu0 0.0
        %263 = vmatprep.subr.mxu0 0.0
        %264 = vmatpush1.msra.mxu0 0.0
        %265 = vmatprep.subr.mxu0 0.0
        %266 = vmatpush1.msra.mxu0 0.0
        %267 = vmatprep.subr.mxu0 0.0
        %268 = vmatpush1.msra.mxu0 0.0
        %269 = vmatprep.subr.mxu0 0.0
        %270 = vmatpush1.msra.mxu0 0.0
        %271 = vmatprep.subr.mxu0 0.0
        %272 = vmatpush1.msra.mxu0 0.0
        %273 = vmatprep.subr.mxu0 0.0
        %274 = vmatpush1.msra.mxu0 0.0
        %275 = vmatprep.subr.mxu0 0.0
        %276 = vmatpush1.msra.mxu0 0.0
        %277 = vmatprep.subr.mxu0 0.0
        %278 = vmatpush1.msra.mxu0 0.0
        %279 = vmatprep.subr.mxu0 0.0
        %280 = vmatpush1.msra.mxu0 0.0
        %281 = vmatprep.subr.mxu0 0.0
        %282 = vmatpush1.msra.mxu0 0.0
        %283 = vmatprep.subr.mxu0 0.0
        %284 = vmatpush1.msra.mxu0 0.0
        %285 = vmatprep.subr.mxu0 0.0
        %286 = vmatpush1.msra.mxu0 0.0
        %287 = vmatprep.subr.mxu0 0.0
        %288 = vmatpush1.msra.mxu0 0.0
        %289 = vmatprep.subr.mxu0 0.0
        %290 = vmatpush1.msra.mxu0 0.0
        %291 = vmatprep.subr.mxu0 0.0
        %292 = vmatpush1.msra.mxu0 0.0
        %293 = vmatprep.subr.mxu0 0.0
        %294 = vmatpush1.msra.mxu0 0.0
        %295 = vmatprep.subr.mxu0 0.0
        %296 = vmatpush1.msra.mxu0 0.0
        %297 = vmatprep.subr.mxu0 0.0
        %298 = vmatpush1.msra.mxu0 0.0
        %299 = vmatprep.subr.mxu0 0.0
        %300 = vmatpush1.msra.mxu0 0.0
        %301 = vmatprep.mubr.f32.mxu0 0.0
        %302 = vmatmul.mubr.f32.gmra.mrb[0].mxu0 %v235
        %v303 = vpop.f32.mrb[0].mxu0
        %v304 = vadd.f32 %v231, %v303
        %v305 = vpop.f32.mrb[0].mxu0
        %306 = vdwg.mxu0
        %307 = vst.msk [vmem:[%s185] sm:$0xff] %vm233, %v304
        %s308 = sand.u32 %s109, 1
        %s309 = scalar_lea.sflag [#allocation4], %s308
        %s310 = sand.u32 %s109, 1
        %s311 = smul.addr %s310, 8
        %s312 = scalar_lea.vmem [#allocation3], %s311
        // Predicated region
        $region33: #{self_attention.5} parent=31 // pred_check
          %p313 = pneg %p119
        $region34: #{self_attention.5} parent=31 // pred_check_branch
          %315 = sbr.rel (%p313) target = $region36
        $region35: #{self_attention.5} parent=31 // pred_region
          %s317 = ssub.s32 128, 128
          %318 = vsyncadd %s309, %s317
          %s319 = sadd.s32 %s22, %s21
          %s320 = smul.addr %s319, 128
          %s321 = scalar_lea.hbm %s3, %s320
          %s323 = sshll.u32 %s312, 4
          %s324 = int_to_ptr.vmem [resolvable:$true] %s323
          %326 = dma.vmem_to_hbm [thread:$0]  %s324, 128, %s321, %s309
        $region36: #{self_attention.5} parent=31 // pred_fallthru
          _
      $region32: #{self_attention.5} parent=5 // pred_fallthru
        _
      %p327 = scmp.le.s32.totalorder 2, %s12
      // Predicated region
      $region37: #{self_attention.5} parent=5 // pred_check
        %p328 = pneg %p327
      $region38: #{self_attention.5} parent=5 // pred_check_branch
        %330 = sbr.rel (%p328) target = $region40
      $region39: #{self_attention.5} parent=5 // pred_region
        %s331 = ssub.s32 %s12, 2
        // Predicated region
        $region41: #{self_attention.5} parent=39 // pred_check
          %p332 = pneg %p125
        $region42: #{self_attention.5} parent=39 // pred_check_branch
          %334 = sbr.rel (%p332) target = $region44
        $region43: #{self_attention.5} parent=39 // pred_region
          %s335 = sand.u32 %s110, 1
          %s336 = scalar_lea.sflag [#allocation4], %s335
          %s337 = sand.u32 %s110, 1
          %s338 = smul.addr %s337, 8
          %s339 = scalar_lea.vmem [#allocation3], %s338
          %340 = dma.done %s336, 128
        $region44: #{self_attention.5} parent=39 // pred_fallthru
          _
      $region40: #{self_attention.5} parent=5 // pred_fallthru
        _
    $region6: #{self_attention.5} parent=1 // loop_footer
      %s16 = sadd.s32 1, %s12
    $region7: #{self_attention.5} parent=1 // loop_footer_branch
      %11 = sbr.rel target = $region3
    $region8: #{self_attention.5} parent=1 // loop_exit
      _
    %341 = vsyncpa [#allocation4], 1
    %s342 = scalar_lea.sflag [#allocation4], 1
    %343 = vsyncpa %s342, 1

</llo_original>
